<compile_context>
chip_gen: v5e
topology: v5e:2x2
jax: 0.10.0
libtpu: 0.0.40
codegen_flags: <defaults>
</compile_context>

<pallas_src>
import jax
import jax.numpy as jnp
from jax.experimental import pallas as pl
from jax.experimental.pallas import tpu as pltpu

# ------------------------- model config (small, synthetic) -------------------------
VOCAB = 100
SEQ = 8
HIDDEN = 32
HEADS = 4
HEAD_DIM = HIDDEN // HEADS
FFN = 64
LAYERS = 2
NUM_LABELS = 3
BATCH = 2


# ------------------------------ in-kernel helpers ----------------------------------
def _erf_approx(x):
    # Abramowitz & Stegun 7.1.26 rational approximation (|err| < 1.5e-7): numerically the
    # exact erf-based GELU that HF BERT uses, built only from abs/where/exp/mul/add/div.
    a1, a2, a3, a4, a5 = 0.254829592, -0.284496736, 1.421413741, -1.453152027, 1.061405429
    p = 0.3275911
    sign = jnp.where(x >= 0.0, 1.0, -1.0)
    ax = jnp.abs(x)
    t = 1.0 / (1.0 + p * ax)
    poly = ((((a5 * t + a4) * t + a3) * t + a2) * t + a1) * t
    return sign * (1.0 - poly * jnp.exp(-ax * ax))


def _gelu_exact(x):
    return 0.5 * x * (1.0 + _erf_approx(x * 0.7071067811865476))


def _ln_residual(x, g, b):
    # LayerNorm(x) where x already includes the residual sum; stats in f32.
    mu = jnp.mean(x, axis=-1, keepdims=True)
    var = jnp.mean(jnp.square(x - mu), axis=-1, keepdims=True)
    return (x - mu) * jax.lax.rsqrt(var + 1e-12) * g + b


def _mm(x, w):
    # bf16 MXU inputs, f32 accumulation.
    return jnp.dot(x.astype(jnp.bfloat16), w.astype(jnp.bfloat16),
                   preferred_element_type=jnp.float32)


# ------------------------------ fused forward kernel --------------------------------
def _bert_forward_kernel(
    x0_ref, maskf_ref, onehot_ref,
    emb_g_ref, emb_b_ref,
    wqkv_ref, bqkv_ref, wo_ref, bo_ref, ln1_g_ref, ln1_b_ref,
    w1_ref, b1_ref, w2_ref, b2_ref, ln2_g_ref, ln2_b_ref,
    pool_w_ref, pool_b_ref, cls_w_ref, cls_b_ref,
    loss_ref, logits_ref,
):
    B, S, H, NH, D = BATCH, SEQ, HIDDEN, HEADS, HEAD_DIM
    scale = 1.0 / (D ** 0.5)

    # --- embedding layernorm ---
    h = _ln_residual(x0_ref[...], emb_g_ref[...], emb_b_ref[...])       # (B*S, H) f32

    # --- additive attention mask, kept in f32 ---
    neg = (1.0 - maskf_ref[...]) * (-1e9)                                # (B, S)
    neg3 = neg[:, None, :]                                               # (B, 1, S)

    # --- encoder layers (statically unrolled; weights stacked on a leading L axis) ---
    for li in range(LAYERS):
        # fused QKV projection: one (B*S, H) x (H, 3H) matmul
        qkv = _mm(h, wqkv_ref[li]) + bqkv_ref[li]                        # (B*S, 3H) f32

        ctx_heads = []
        for hh in range(NH):                                             # per-head, in VMEM
            qh = qkv[:, hh * D:(hh + 1) * D].reshape(B, S, D)
            kh = qkv[:, H + hh * D:H + (hh + 1) * D].reshape(B, S, D)
            vh = qkv[:, 2 * H + hh * D:2 * H + (hh + 1) * D].reshape(B, S, D)

            sc = jnp.einsum("bqd,bkd->bqk",
                            qh.astype(jnp.bfloat16), kh.astype(jnp.bfloat16),
                            preferred_element_type=jnp.float32)          # (B, S, S)
            sc = sc * scale + neg3
            sc = sc - jnp.max(sc, axis=-1, keepdims=True)
            p = jnp.exp(sc)
            p = p * pl.reciprocal(jnp.sum(p, axis=-1, keepdims=True), approx=True)

            ctx_h = jnp.einsum("bqk,bkd->bqd",
                               p.astype(jnp.bfloat16), vh.astype(jnp.bfloat16),
                               preferred_element_type=jnp.float32)       # (B, S, D)
            ctx_heads.append(ctx_h.reshape(B * S, D))

        ctx = jnp.concatenate(ctx_heads, axis=-1)                        # (B*S, H)
        attn_out = _mm(ctx, wo_ref[li]) + bo_ref[li]

        h1 = _ln_residual(h + attn_out, ln1_g_ref[li], ln1_b_ref[li])    # residual + LN fused
        f = _gelu_exact(_mm(h1, w1_ref[li]) + b1_ref[li])
        f = _mm(f, w2_ref[li]) + b2_ref[li]
        h = _ln_residual(h1 + f, ln2_g_ref[li], ln2_b_ref[li])           # residual + LN fused

    # --- pooler ([CLS] token) + classifier + softmax cross-entropy, all fused ---
    h3 = h.reshape(B, S, H)
    cls_tok = h3[:, 0:1, :].reshape(B, H)                                # (B, H)
    pooled = jnp.tanh(_mm(cls_tok, pool_w_ref[...]) + pool_b_ref[...])
    logits = _mm(pooled, cls_w_ref[...]) + cls_b_ref[...]                # (B, NUM_LABELS)
    logits_ref[...] = logits

    z = logits - jnp.max(logits, axis=-1, keepdims=True)
    logp = z - jnp.log(jnp.sum(jnp.exp(z), axis=-1, keepdims=True))
    per_ex = -jnp.sum(onehot_ref[...] * logp, axis=-1, keepdims=True)    # (B, 1)
    loss_ref[...] = jnp.sum(per_ex, axis=0, keepdims=True) * (1.0 / B)   # (1, 1)


def bert_forward_pallas(x0, maskf, onehot, params):
    vmem = pl.BlockSpec(memory_space=pltpu.MemorySpace.VMEM)
    return pl.pallas_call(
        _bert_forward_kernel,
        out_shape=(
            jax.ShapeDtypeStruct((1, 1), jnp.float32),                   # loss
            jax.ShapeDtypeStruct((BATCH, NUM_LABELS), jnp.float32),      # logits
        ),
        in_specs=[vmem] * 21,
        out_specs=(vmem, vmem),
    )(
        x0, maskf, onehot,
        params["emb_ln_g"], params["emb_ln_b"],
        params["wqkv"], params["bqkv"], params["wo"], params["bo"],
        params["ln1_g"], params["ln1_b"],
        params["w1"], params["b1"], params["w2"], params["b2"],
        params["ln2_g"], params["ln2_b"],
        params["pool_w"], params["pool_b"], params["cls_w"], params["cls_b"],
    )


# ------------------------------- parameters ----------------------------------------
def init_params(key):
    def nrm(k, shape, scale=0.02):
        return scale * jax.random.normal(k, shape, dtype=jnp.float32)

    keys = jax.random.split(key, 4 + LAYERS)
    params = {
        "word_emb": nrm(keys[0], (VOCAB, HIDDEN)),
        "pos_emb": nrm(keys[1], (SEQ, HIDDEN)),
        "emb_ln_g": jnp.ones((1, HIDDEN), jnp.float32),
        "emb_ln_b": jnp.zeros((1, HIDDEN), jnp.float32),
        "pool_w": nrm(keys[2], (HIDDEN, HIDDEN)),
        "pool_b": jnp.zeros((1, HIDDEN), jnp.float32),
        "cls_w": nrm(keys[3], (HIDDEN, NUM_LABELS)),
        "cls_b": jnp.zeros((1, NUM_LABELS), jnp.float32),
    }
    wqkv, wo, w1, w2 = [], [], [], []
    for li in range(LAYERS):
        lk = jax.random.split(keys[4 + li], 6)
        wq = nrm(lk[0], (HIDDEN, HIDDEN))
        wk = nrm(lk[1], (HIDDEN, HIDDEN))
        wv = nrm(lk[2], (HIDDEN, HIDDEN))
        wqkv.append(jnp.concatenate([wq, wk, wv], axis=1))               # fused QKV weight
        wo.append(nrm(lk[3], (HIDDEN, HIDDEN)))
        w1.append(nrm(lk[4], (HIDDEN, FFN)))
        w2.append(nrm(lk[5], (FFN, HIDDEN)))
    params.update({
        "wqkv": jnp.stack(wqkv),                                         # (L, H, 3H)
        "bqkv": jnp.zeros((LAYERS, 1, 3 * HIDDEN), jnp.float32),
        "wo": jnp.stack(wo),                                             # (L, H, H)
        "bo": jnp.zeros((LAYERS, 1, HIDDEN), jnp.float32),
        "ln1_g": jnp.ones((LAYERS, 1, HIDDEN), jnp.float32),
        "ln1_b": jnp.zeros((LAYERS, 1, HIDDEN), jnp.float32),
        "w1": jnp.stack(w1),                                             # (L, H, F)
        "b1": jnp.zeros((LAYERS, 1, FFN), jnp.float32),
        "w2": jnp.stack(w2),                                             # (L, F, H)
        "b2": jnp.zeros((LAYERS, 1, HIDDEN), jnp.float32),
        "ln2_g": jnp.ones((LAYERS, 1, HIDDEN), jnp.float32),
        "ln2_b": jnp.zeros((LAYERS, 1, HIDDEN), jnp.float32),
    })
    return params


# --------------------------------- forward -----------------------------------------
def forward(params, input_ids, attention_mask, labels):
    """Mirrors HF `model(input_ids, attention_mask, labels, return_dict=False)`:
    returns (loss, logits)."""
    B, S = input_ids.shape

    # Embedding lookup is glue (XLA gather); everything downstream runs in ONE fused
    # Pallas kernel so no intermediate ever round-trips through HBM.
    x0 = (params["word_emb"][input_ids] + params["pos_emb"][None, :S, :]).reshape(B * S, HIDDEN)
    maskf = attention_mask.astype(jnp.float32)                           # (B, S)
    onehot = jax.nn.one_hot(labels, NUM_LABELS, dtype=jnp.float32)       # (B, NUM_LABELS)

    loss, logits = bert_forward_pallas(x0, maskf, onehot, params)
    return loss[0, 0], logits


# ----------------------------------- main -------------------------------------------
if __name__ == "__main__":
    key = jax.random.PRNGKey(0)
    k_param, k_ids, k_lbl = jax.random.split(key, 3)

    params = init_params(k_param)

    input_ids = jax.random.randint(k_ids, (BATCH, SEQ), 0, VOCAB, dtype=jnp.int32)
    attention_mask = jnp.ones((BATCH, SEQ), dtype=jnp.int32)
    attention_mask = attention_mask.at[1, SEQ - 2:].set(0)  # pad the tail of batch item 1
    labels = jax.random.randint(k_lbl, (BATCH,), 0, NUM_LABELS, dtype=jnp.int32)

    fwd = jax.jit(forward)
    loss, logits = fwd(params, input_ids, attention_mask, labels)
    jax.block_until_ready((loss, logits))

    assert logits.shape == (BATCH, NUM_LABELS)
    assert loss.shape == ()
    print("KERNEL_OK")
</pallas_src>

<mosaic_0001>
module attributes {stable_mosaic.version = 11 : i64} {
  func.func @_bert_forward_kernel(%arg0: memref<16x32xf32, #tpu.memory_space<vmem>>, %arg1: memref<2x8xf32, #tpu.memory_space<vmem>>, %arg2: memref<2x3xf32, #tpu.memory_space<vmem>>, %arg3: memref<1x32xf32, #tpu.memory_space<vmem>>, %arg4: memref<1x32xf32, #tpu.memory_space<vmem>>, %arg5: memref<2x32x96xf32, #tpu.memory_space<vmem>>, %arg6: memref<2x1x96xf32, #tpu.memory_space<vmem>>, %arg7: memref<2x32x32xf32, #tpu.memory_space<vmem>>, %arg8: memref<2x1x32xf32, #tpu.memory_space<vmem>>, %arg9: memref<2x1x32xf32, #tpu.memory_space<vmem>>, %arg10: memref<2x1x32xf32, #tpu.memory_space<vmem>>, %arg11: memref<2x32x64xf32, #tpu.memory_space<vmem>>, %arg12: memref<2x1x64xf32, #tpu.memory_space<vmem>>, %arg13: memref<2x64x32xf32, #tpu.memory_space<vmem>>, %arg14: memref<2x1x32xf32, #tpu.memory_space<vmem>>, %arg15: memref<2x1x32xf32, #tpu.memory_space<vmem>>, %arg16: memref<2x1x32xf32, #tpu.memory_space<vmem>>, %arg17: memref<32x32xf32, #tpu.memory_space<vmem>>, %arg18: memref<1x32xf32, #tpu.memory_space<vmem>>, %arg19: memref<32x3xf32, #tpu.memory_space<vmem>>, %arg20: memref<1x3xf32, #tpu.memory_space<vmem>>, %arg21: memref<1x1xf32, #tpu.memory_space<vmem>>, %arg22: memref<2x3xf32, #tpu.memory_space<vmem>>) attributes {dimension_semantics = [], scalar_prefetch = 0 : i64, scratch_operands = 0 : i64, tpu.core_type = #tpu.core_type<tc>} {
    %c0 = arith.constant 0 : index
    %c0_0 = arith.constant 0 : index
    %0 = vector.load %arg0[%c0, %c0_0] : memref<16x32xf32, #tpu.memory_space<vmem>>, vector<16x32xf32>
    %c0_1 = arith.constant 0 : index
    %c0_2 = arith.constant 0 : index
    %1 = vector.load %arg3[%c0_1, %c0_2] : memref<1x32xf32, #tpu.memory_space<vmem>>, vector<1x32xf32>
    %c0_3 = arith.constant 0 : index
    %c0_4 = arith.constant 0 : index
    %2 = vector.load %arg4[%c0_3, %c0_4] : memref<1x32xf32, #tpu.memory_space<vmem>>, vector<1x32xf32>
    %cst = arith.constant dense<0.000000e+00> : vector<16xf32>
    %3 = vector.multi_reduction <add>, %0, %cst [1] : vector<16x32xf32> to vector<16xf32>
    %4 = vector.shape_cast %3 : vector<16xf32> to vector<16x1xf32>
    %cst_5 = arith.constant 3.200000e+01 : f32
    %5 = vector.broadcast %cst_5 : f32 to vector<16x1xf32>
    %6 = arith.divf %4, %5 : vector<16x1xf32>
    %7 = vector.broadcast %6 : vector<16x1xf32> to vector<16x32xf32>
    %8 = arith.subf %0, %7 : vector<16x32xf32>
    %9 = arith.mulf %8, %8 : vector<16x32xf32>
    %cst_6 = arith.constant dense<0.000000e+00> : vector<16xf32>
    %10 = vector.multi_reduction <add>, %9, %cst_6 [1] : vector<16x32xf32> to vector<16xf32>
    %11 = vector.shape_cast %10 : vector<16xf32> to vector<16x1xf32>
    %cst_7 = arith.constant 3.200000e+01 : f32
    %12 = vector.broadcast %cst_7 : f32 to vector<16x1xf32>
    %13 = arith.divf %11, %12 : vector<16x1xf32>
    %14 = vector.broadcast %6 : vector<16x1xf32> to vector<16x32xf32>
    %15 = arith.subf %0, %14 : vector<16x32xf32>
    %cst_8 = arith.constant 9.99999996E-13 : f32
    %16 = vector.broadcast %cst_8 : f32 to vector<16x1xf32>
    %17 = arith.addf %13, %16 : vector<16x1xf32>
    %18 = math.rsqrt %17 : vector<16x1xf32>
    %19 = vector.broadcast %18 : vector<16x1xf32> to vector<16x32xf32>
    %20 = arith.mulf %15, %19 : vector<16x32xf32>
    %21 = vector.broadcast %1 : vector<1x32xf32> to vector<16x32xf32>
    %22 = arith.mulf %20, %21 : vector<16x32xf32>
    %23 = vector.broadcast %2 : vector<1x32xf32> to vector<16x32xf32>
    %24 = arith.addf %22, %23 : vector<16x32xf32>
    %c0_9 = arith.constant 0 : index
    %c0_10 = arith.constant 0 : index
    %25 = vector.load %arg1[%c0_9, %c0_10] : memref<2x8xf32, #tpu.memory_space<vmem>>, vector<2x8xf32>
    %cst_11 = arith.constant 1.000000e+00 : f32
    %26 = vector.broadcast %cst_11 : f32 to vector<2x8xf32>
    %27 = arith.subf %26, %25 : vector<2x8xf32>
    %cst_12 = arith.constant -1.000000e+09 : f32
    %28 = vector.broadcast %cst_12 : f32 to vector<2x8xf32>
    %29 = arith.mulf %27, %28 : vector<2x8xf32>
    %30 = vector.shape_cast %29 : vector<2x8xf32> to vector<2x1x8xf32>
    %c0_13 = arith.constant 0 : index
    %c0_14 = arith.constant 0 : index
    %c0_15 = arith.constant 0 : index
    %31 = vector.load %arg5[%c0_13, %c0_14, %c0_15] : memref<2x32x96xf32, #tpu.memory_space<vmem>>, vector<1x32x96xf32>
    %32 = vector.shape_cast %31 : vector<1x32x96xf32> to vector<32x96xf32>
    %33 = arith.truncf %24 : vector<16x32xf32> to vector<16x32xbf16>
    %34 = arith.truncf %32 : vector<32x96xf32> to vector<32x96xbf16>
    %cst_16 = arith.constant dense<0.000000e+00> : vector<16x96xf32>
    %35 = tpu.matmul %33, %34, %cst_16 {dimension_numbers = #tpu.dot_dimension_numbers<[1], [0], [0], [1], [0, 0, 1, 1], [], []>} : vector<16x32xbf16>, vector<32x96xbf16>, vector<16x96xf32> -> vector<16x96xf32>
    %c0_17 = arith.constant 0 : index
    %c0_18 = arith.constant 0 : index
    %c0_19 = arith.constant 0 : index
    %36 = vector.load %arg6[%c0_17, %c0_18, %c0_19] : memref<2x1x96xf32, #tpu.memory_space<vmem>>, vector<1x1x96xf32>
    %37 = vector.shape_cast %36 : vector<1x1x96xf32> to vector<1x96xf32>
    %38 = vector.broadcast %37 : vector<1x96xf32> to vector<16x96xf32>
    %39 = arith.addf %35, %38 : vector<16x96xf32>
    %40 = vector.extract_strided_slice %39 {offsets = [0, 0], sizes = [16, 8], strides = [1, 1]} : vector<16x96xf32> to vector<16x8xf32>
    %41 = vector.shape_cast %40 : vector<16x8xf32> to vector<2x8x8xf32>
    %42 = vector.extract_strided_slice %39 {offsets = [0, 32], sizes = [16, 8], strides = [1, 1]} : vector<16x96xf32> to vector<16x8xf32>
    %43 = vector.shape_cast %42 : vector<16x8xf32> to vector<2x8x8xf32>
    %44 = vector.extract_strided_slice %39 {offsets = [0, 64], sizes = [16, 8], strides = [1, 1]} : vector<16x96xf32> to vector<16x8xf32>
    %45 = vector.shape_cast %44 : vector<16x8xf32> to vector<2x8x8xf32>
    %46 = arith.truncf %41 : vector<2x8x8xf32> to vector<2x8x8xbf16>
    %47 = arith.truncf %43 : vector<2x8x8xf32> to vector<2x8x8xbf16>
    "tpu.trace_start"() <{level = 10 : i32, message = "bqd,bkd->bqk"}> : () -> ()
    %cst_20 = arith.constant dense<0.000000e+00> : vector<2x8x8xf32>
    %48 = tpu.matmul %46, %47, %cst_20 {dimension_numbers = #tpu.dot_dimension_numbers<[2], [2], [1], [1], [0, 0, 0, 1, 1, 1], [0], [0]>} : vector<2x8x8xbf16>, vector<2x8x8xbf16>, vector<2x8x8xf32> -> vector<2x8x8xf32>
    "tpu.trace_stop"() : () -> ()
    %cst_21 = arith.constant 0.353553385 : f32
    %49 = vector.broadcast %cst_21 : f32 to vector<2x8x8xf32>
    %50 = arith.mulf %48, %49 : vector<2x8x8xf32>
    %51 = vector.broadcast %30 : vector<2x1x8xf32> to vector<2x8x8xf32>
    %52 = arith.addf %50, %51 : vector<2x8x8xf32>
    %cst_22 = arith.constant dense<0xFF800000> : vector<2x8xf32>
    %53 = vector.multi_reduction <maximumf>, %52, %cst_22 [2] : vector<2x8x8xf32> to vector<2x8xf32>
    %54 = vector.shape_cast %53 : vector<2x8xf32> to vector<2x8x1xf32>
    %55 = vector.broadcast %54 : vector<2x8x1xf32> to vector<2x8x8xf32>
    %56 = arith.subf %52, %55 : vector<2x8x8xf32>
    %57 = math.exp %56 : vector<2x8x8xf32>
    %cst_23 = arith.constant dense<0.000000e+00> : vector<2x8xf32>
    %58 = vector.multi_reduction <add>, %57, %cst_23 [2] : vector<2x8x8xf32> to vector<2x8xf32>
    %59 = vector.shape_cast %58 : vector<2x8xf32> to vector<2x8x1xf32>
    %60 = tpu.reciprocal %59 {approx = true} : vector<2x8x1xf32> -> vector<2x8x1xf32>
    %61 = vector.broadcast %60 : vector<2x8x1xf32> to vector<2x8x8xf32>
    %62 = arith.mulf %57, %61 : vector<2x8x8xf32>
    %63 = arith.truncf %62 : vector<2x8x8xf32> to vector<2x8x8xbf16>
    %64 = arith.truncf %45 : vector<2x8x8xf32> to vector<2x8x8xbf16>
    "tpu.trace_start"() <{level = 10 : i32, message = "bqk,bkd->bqd"}> : () -> ()
    %cst_24 = arith.constant dense<0.000000e+00> : vector<2x8x8xf32>
    %65 = tpu.matmul %63, %64, %cst_24 {dimension_numbers = #tpu.dot_dimension_numbers<[2], [1], [1], [2], [0, 0, 0, 1, 1, 2], [0], [0]>} : vector<2x8x8xbf16>, vector<2x8x8xbf16>, vector<2x8x8xf32> -> vector<2x8x8xf32>
    "tpu.trace_stop"() : () -> ()
    %66 = vector.shape_cast %65 : vector<2x8x8xf32> to vector<16x8xf32>
    %67 = vector.extract_strided_slice %39 {offsets = [0, 8], sizes = [16, 8], strides = [1, 1]} : vector<16x96xf32> to vector<16x8xf32>
    %68 = vector.shape_cast %67 : vector<16x8xf32> to vector<2x8x8xf32>
    %69 = vector.extract_strided_slice %39 {offsets = [0, 40], sizes = [16, 8], strides = [1, 1]} : vector<16x96xf32> to vector<16x8xf32>
    %70 = vector.shape_cast %69 : vector<16x8xf32> to vector<2x8x8xf32>
    %71 = vector.extract_strided_slice %39 {offsets = [0, 72], sizes = [16, 8], strides = [1, 1]} : vector<16x96xf32> to vector<16x8xf32>
    %72 = vector.shape_cast %71 : vector<16x8xf32> to vector<2x8x8xf32>
    %73 = arith.truncf %68 : vector<2x8x8xf32> to vector<2x8x8xbf16>
    %74 = arith.truncf %70 : vector<2x8x8xf32> to vector<2x8x8xbf16>
    "tpu.trace_start"() <{level = 10 : i32, message = "bqd,bkd->bqk"}> : () -> ()
    %cst_25 = arith.constant dense<0.000000e+00> : vector<2x8x8xf32>
    %75 = tpu.matmul %73, %74, %cst_25 {dimension_numbers = #tpu.dot_dimension_numbers<[2], [2], [1], [1], [0, 0, 0, 1, 1, 1], [0], [0]>} : vector<2x8x8xbf16>, vector<2x8x8xbf16>, vector<2x8x8xf32> -> vector<2x8x8xf32>
    "tpu.trace_stop"() : () -> ()
    %cst_26 = arith.constant 0.353553385 : f32
    %76 = vector.broadcast %cst_26 : f32 to vector<2x8x8xf32>
    %77 = arith.mulf %75, %76 : vector<2x8x8xf32>
    %78 = vector.broadcast %30 : vector<2x1x8xf32> to vector<2x8x8xf32>
    %79 = arith.addf %77, %78 : vector<2x8x8xf32>
    %cst_27 = arith.constant dense<0xFF800000> : vector<2x8xf32>
    %80 = vector.multi_reduction <maximumf>, %79, %cst_27 [2] : vector<2x8x8xf32> to vector<2x8xf32>
    %81 = vector.shape_cast %80 : vector<2x8xf32> to vector<2x8x1xf32>
    %82 = vector.broadcast %81 : vector<2x8x1xf32> to vector<2x8x8xf32>
    %83 = arith.subf %79, %82 : vector<2x8x8xf32>
    %84 = math.exp %83 : vector<2x8x8xf32>
    %cst_28 = arith.constant dense<0.000000e+00> : vector<2x8xf32>
    %85 = vector.multi_reduction <add>, %84, %cst_28 [2] : vector<2x8x8xf32> to vector<2x8xf32>
    %86 = vector.shape_cast %85 : vector<2x8xf32> to vector<2x8x1xf32>
    %87 = tpu.reciprocal %86 {approx = true} : vector<2x8x1xf32> -> vector<2x8x1xf32>
    %88 = vector.broadcast %87 : vector<2x8x1xf32> to vector<2x8x8xf32>
    %89 = arith.mulf %84, %88 : vector<2x8x8xf32>
    %90 = arith.truncf %89 : vector<2x8x8xf32> to vector<2x8x8xbf16>
    %91 = arith.truncf %72 : vector<2x8x8xf32> to vector<2x8x8xbf16>
    "tpu.trace_start"() <{level = 10 : i32, message = "bqk,bkd->bqd"}> : () -> ()
    %cst_29 = arith.constant dense<0.000000e+00> : vector<2x8x8xf32>
    %92 = tpu.matmul %90, %91, %cst_29 {dimension_numbers = #tpu.dot_dimension_numbers<[2], [1], [1], [2], [0, 0, 0, 1, 1, 2], [0], [0]>} : vector<2x8x8xbf16>, vector<2x8x8xbf16>, vector<2x8x8xf32> -> vector<2x8x8xf32>
    "tpu.trace_stop"() : () -> ()
    %93 = vector.shape_cast %92 : vector<2x8x8xf32> to vector<16x8xf32>
    %94 = vector.extract_strided_slice %39 {offsets = [0, 16], sizes = [16, 8], strides = [1, 1]} : vector<16x96xf32> to vector<16x8xf32>
    %95 = vector.shape_cast %94 : vector<16x8xf32> to vector<2x8x8xf32>
    %96 = vector.extract_strided_slice %39 {offsets = [0, 48], sizes = [16, 8], strides = [1, 1]} : vector<16x96xf32> to vector<16x8xf32>
    %97 = vector.shape_cast %96 : vector<16x8xf32> to vector<2x8x8xf32>
    %98 = vector.extract_strided_slice %39 {offsets = [0, 80], sizes = [16, 8], strides = [1, 1]} : vector<16x96xf32> to vector<16x8xf32>
    %99 = vector.shape_cast %98 : vector<16x8xf32> to vector<2x8x8xf32>
    %100 = arith.truncf %95 : vector<2x8x8xf32> to vector<2x8x8xbf16>
    %101 = arith.truncf %97 : vector<2x8x8xf32> to vector<2x8x8xbf16>
    "tpu.trace_start"() <{level = 10 : i32, message = "bqd,bkd->bqk"}> : () -> ()
    %cst_30 = arith.constant dense<0.000000e+00> : vector<2x8x8xf32>
    %102 = tpu.matmul %100, %101, %cst_30 {dimension_numbers = #tpu.dot_dimension_numbers<[2], [2], [1], [1], [0, 0, 0, 1, 1, 1], [0], [0]>} : vector<2x8x8xbf16>, vector<2x8x8xbf16>, vector<2x8x8xf32> -> vector<2x8x8xf32>
    "tpu.trace_stop"() : () -> ()
    %cst_31 = arith.constant 0.353553385 : f32
    %103 = vector.broadcast %cst_31 : f32 to vector<2x8x8xf32>
    %104 = arith.mulf %102, %103 : vector<2x8x8xf32>
    %105 = vector.broadcast %30 : vector<2x1x8xf32> to vector<2x8x8xf32>
    %106 = arith.addf %104, %105 : vector<2x8x8xf32>
    %cst_32 = arith.constant dense<0xFF800000> : vector<2x8xf32>
    %107 = vector.multi_reduction <maximumf>, %106, %cst_32 [2] : vector<2x8x8xf32> to vector<2x8xf32>
    %108 = vector.shape_cast %107 : vector<2x8xf32> to vector<2x8x1xf32>
    %109 = vector.broadcast %108 : vector<2x8x1xf32> to vector<2x8x8xf32>
    %110 = arith.subf %106, %109 : vector<2x8x8xf32>
    %111 = math.exp %110 : vector<2x8x8xf32>
    %cst_33 = arith.constant dense<0.000000e+00> : vector<2x8xf32>
    %112 = vector.multi_reduction <add>, %111, %cst_33 [2] : vector<2x8x8xf32> to vector<2x8xf32>
    %113 = vector.shape_cast %112 : vector<2x8xf32> to vector<2x8x1xf32>
    %114 = tpu.reciprocal %113 {approx = true} : vector<2x8x1xf32> -> vector<2x8x1xf32>
    %115 = vector.broadcast %114 : vector<2x8x1xf32> to vector<2x8x8xf32>
    %116 = arith.mulf %111, %115 : vector<2x8x8xf32>
    %117 = arith.truncf %116 : vector<2x8x8xf32> to vector<2x8x8xbf16>
    %118 = arith.truncf %99 : vector<2x8x8xf32> to vector<2x8x8xbf16>
    "tpu.trace_start"() <{level = 10 : i32, message = "bqk,bkd->bqd"}> : () -> ()
    %cst_34 = arith.constant dense<0.000000e+00> : vector<2x8x8xf32>
    %119 = tpu.matmul %117, %118, %cst_34 {dimension_numbers = #tpu.dot_dimension_numbers<[2], [1], [1], [2], [0, 0, 0, 1, 1, 2], [0], [0]>} : vector<2x8x8xbf16>, vector<2x8x8xbf16>, vector<2x8x8xf32> -> vector<2x8x8xf32>
    "tpu.trace_stop"() : () -> ()
    %120 = vector.shape_cast %119 : vector<2x8x8xf32> to vector<16x8xf32>
    %121 = vector.extract_strided_slice %39 {offsets = [0, 24], sizes = [16, 8], strides = [1, 1]} : vector<16x96xf32> to vector<16x8xf32>
    %122 = vector.shape_cast %121 : vector<16x8xf32> to vector<2x8x8xf32>
    %123 = vector.extract_strided_slice %39 {offsets = [0, 56], sizes = [16, 8], strides = [1, 1]} : vector<16x96xf32> to vector<16x8xf32>
    %124 = vector.shape_cast %123 : vector<16x8xf32> to vector<2x8x8xf32>
    %125 = vector.extract_strided_slice %39 {offsets = [0, 88], sizes = [16, 8], strides = [1, 1]} : vector<16x96xf32> to vector<16x8xf32>
    %126 = vector.shape_cast %125 : vector<16x8xf32> to vector<2x8x8xf32>
    %127 = arith.truncf %122 : vector<2x8x8xf32> to vector<2x8x8xbf16>
    %128 = arith.truncf %124 : vector<2x8x8xf32> to vector<2x8x8xbf16>
    "tpu.trace_start"() <{level = 10 : i32, message = "bqd,bkd->bqk"}> : () -> ()
    %cst_35 = arith.constant dense<0.000000e+00> : vector<2x8x8xf32>
    %129 = tpu.matmul %127, %128, %cst_35 {dimension_numbers = #tpu.dot_dimension_numbers<[2], [2], [1], [1], [0, 0, 0, 1, 1, 1], [0], [0]>} : vector<2x8x8xbf16>, vector<2x8x8xbf16>, vector<2x8x8xf32> -> vector<2x8x8xf32>
    "tpu.trace_stop"() : () -> ()
    %cst_36 = arith.constant 0.353553385 : f32
    %130 = vector.broadcast %cst_36 : f32 to vector<2x8x8xf32>
    %131 = arith.mulf %129, %130 : vector<2x8x8xf32>
    %132 = vector.broadcast %30 : vector<2x1x8xf32> to vector<2x8x8xf32>
    %133 = arith.addf %131, %132 : vector<2x8x8xf32>
    %cst_37 = arith.constant dense<0xFF800000> : vector<2x8xf32>
    %134 = vector.multi_reduction <maximumf>, %133, %cst_37 [2] : vector<2x8x8xf32> to vector<2x8xf32>
    %135 = vector.shape_cast %134 : vector<2x8xf32> to vector<2x8x1xf32>
    %136 = vector.broadcast %135 : vector<2x8x1xf32> to vector<2x8x8xf32>
    %137 = arith.subf %133, %136 : vector<2x8x8xf32>
    %138 = math.exp %137 : vector<2x8x8xf32>
    %cst_38 = arith.constant dense<0.000000e+00> : vector<2x8xf32>
    %139 = vector.multi_reduction <add>, %138, %cst_38 [2] : vector<2x8x8xf32> to vector<2x8xf32>
    %140 = vector.shape_cast %139 : vector<2x8xf32> to vector<2x8x1xf32>
    %141 = tpu.reciprocal %140 {approx = true} : vector<2x8x1xf32> -> vector<2x8x1xf32>
    %142 = vector.broadcast %141 : vector<2x8x1xf32> to vector<2x8x8xf32>
    %143 = arith.mulf %138, %142 : vector<2x8x8xf32>
    %144 = arith.truncf %143 : vector<2x8x8xf32> to vector<2x8x8xbf16>
    %145 = arith.truncf %126 : vector<2x8x8xf32> to vector<2x8x8xbf16>
    "tpu.trace_start"() <{level = 10 : i32, message = "bqk,bkd->bqd"}> : () -> ()
    %cst_39 = arith.constant dense<0.000000e+00> : vector<2x8x8xf32>
    %146 = tpu.matmul %144, %145, %cst_39 {dimension_numbers = #tpu.dot_dimension_numbers<[2], [1], [1], [2], [0, 0, 0, 1, 1, 2], [0], [0]>} : vector<2x8x8xbf16>, vector<2x8x8xbf16>, vector<2x8x8xf32> -> vector<2x8x8xf32>
    "tpu.trace_stop"() : () -> ()
    %147 = vector.shape_cast %146 : vector<2x8x8xf32> to vector<16x8xf32>
    %148 = tpu.concatenate %66, %93, %120, %147 in 1 : vector<16x8xf32>, vector<16x8xf32>, vector<16x8xf32>, vector<16x8xf32> -> vector<16x32xf32>
    %c0_40 = arith.constant 0 : index
    %c0_41 = arith.constant 0 : index
    %c0_42 = arith.constant 0 : index
    %149 = vector.load %arg7[%c0_40, %c0_41, %c0_42] : memref<2x32x32xf32, #tpu.memory_space<vmem>>, vector<1x32x32xf32>
    %150 = vector.shape_cast %149 : vector<1x32x32xf32> to vector<32x32xf32>
    %151 = arith.truncf %148 : vector<16x32xf32> to vector<16x32xbf16>
    %152 = arith.truncf %150 : vector<32x32xf32> to vector<32x32xbf16>
    %cst_43 = arith.constant dense<0.000000e+00> : vector<16x32xf32>
    %153 = tpu.matmul %151, %152, %cst_43 {dimension_numbers = #tpu.dot_dimension_numbers<[1], [0], [0], [1], [0, 0, 1, 1], [], []>} : vector<16x32xbf16>, vector<32x32xbf16>, vector<16x32xf32> -> vector<16x32xf32>
    %c0_44 = arith.constant 0 : index
    %c0_45 = arith.constant 0 : index
    %c0_46 = arith.constant 0 : index
    %154 = vector.load %arg8[%c0_44, %c0_45, %c0_46] : memref<2x1x32xf32, #tpu.memory_space<vmem>>, vector<1x1x32xf32>
    %155 = vector.shape_cast %154 : vector<1x1x32xf32> to vector<1x32xf32>
    %156 = vector.broadcast %155 : vector<1x32xf32> to vector<16x32xf32>
    %157 = arith.addf %153, %156 : vector<16x32xf32>
    %158 = arith.addf %24, %157 : vector<16x32xf32>
    %c0_47 = arith.constant 0 : index
    %c0_48 = arith.constant 0 : index
    %c0_49 = arith.constant 0 : index
    %159 = vector.load %arg9[%c0_47, %c0_48, %c0_49] : memref<2x1x32xf32, #tpu.memory_space<vmem>>, vector<1x1x32xf32>
    %160 = vector.shape_cast %159 : vector<1x1x32xf32> to vector<1x32xf32>
    %c0_50 = arith.constant 0 : index
    %c0_51 = arith.constant 0 : index
    %c0_52 = arith.constant 0 : index
    %161 = vector.load %arg10[%c0_50, %c0_51, %c0_52] : memref<2x1x32xf32, #tpu.memory_space<vmem>>, vector<1x1x32xf32>
    %162 = vector.shape_cast %161 : vector<1x1x32xf32> to vector<1x32xf32>
    %cst_53 = arith.constant dense<0.000000e+00> : vector<16xf32>
    %163 = vector.multi_reduction <add>, %158, %cst_53 [1] : vector<16x32xf32> to vector<16xf32>
    %164 = vector.shape_cast %163 : vector<16xf32> to vector<16x1xf32>
    %cst_54 = arith.constant 3.200000e+01 : f32
    %165 = vector.broadcast %cst_54 : f32 to vector<16x1xf32>
    %166 = arith.divf %164, %165 : vector<16x1xf32>
    %167 = vector.broadcast %166 : vector<16x1xf32> to vector<16x32xf32>
    %168 = arith.subf %158, %167 : vector<16x32xf32>
    %169 = arith.mulf %168, %168 : vector<16x32xf32>
    %cst_55 = arith.constant dense<0.000000e+00> : vector<16xf32>
    %170 = vector.multi_reduction <add>, %169, %cst_55 [1] : vector<16x32xf32> to vector<16xf32>
    %171 = vector.shape_cast %170 : vector<16xf32> to vector<16x1xf32>
    %cst_56 = arith.constant 3.200000e+01 : f32
    %172 = vector.broadcast %cst_56 : f32 to vector<16x1xf32>
    %173 = arith.divf %171, %172 : vector<16x1xf32>
    %174 = vector.broadcast %166 : vector<16x1xf32> to vector<16x32xf32>
    %175 = arith.subf %158, %174 : vector<16x32xf32>
    %cst_57 = arith.constant 9.99999996E-13 : f32
    %176 = vector.broadcast %cst_57 : f32 to vector<16x1xf32>
    %177 = arith.addf %173, %176 : vector<16x1xf32>
    %178 = math.rsqrt %177 : vector<16x1xf32>
    %179 = vector.broadcast %178 : vector<16x1xf32> to vector<16x32xf32>
    %180 = arith.mulf %175, %179 : vector<16x32xf32>
    %181 = vector.broadcast %160 : vector<1x32xf32> to vector<16x32xf32>
    %182 = arith.mulf %180, %181 : vector<16x32xf32>
    %183 = vector.broadcast %162 : vector<1x32xf32> to vector<16x32xf32>
    %184 = arith.addf %182, %183 : vector<16x32xf32>
    %c0_58 = arith.constant 0 : index
    %c0_59 = arith.constant 0 : index
    %c0_60 = arith.constant 0 : index
    %185 = vector.load %arg11[%c0_58, %c0_59, %c0_60] : memref<2x32x64xf32, #tpu.memory_space<vmem>>, vector<1x32x64xf32>
    %186 = vector.shape_cast %185 : vector<1x32x64xf32> to vector<32x64xf32>
    %187 = arith.truncf %184 : vector<16x32xf32> to vector<16x32xbf16>
    %188 = arith.truncf %186 : vector<32x64xf32> to vector<32x64xbf16>
    %cst_61 = arith.constant dense<0.000000e+00> : vector<16x64xf32>
    %189 = tpu.matmul %187, %188, %cst_61 {dimension_numbers = #tpu.dot_dimension_numbers<[1], [0], [0], [1], [0, 0, 1, 1], [], []>} : vector<16x32xbf16>, vector<32x64xbf16>, vector<16x64xf32> -> vector<16x64xf32>
    %c0_62 = arith.constant 0 : index
    %c0_63 = arith.constant 0 : index
    %c0_64 = arith.constant 0 : index
    %190 = vector.load %arg12[%c0_62, %c0_63, %c0_64] : memref<2x1x64xf32, #tpu.memory_space<vmem>>, vector<1x1x64xf32>
    %191 = vector.shape_cast %190 : vector<1x1x64xf32> to vector<1x64xf32>
    %192 = vector.broadcast %191 : vector<1x64xf32> to vector<16x64xf32>
    %193 = arith.addf %189, %192 : vector<16x64xf32>
    %cst_65 = arith.constant 5.000000e-01 : f32
    %194 = vector.broadcast %cst_65 : f32 to vector<16x64xf32>
    %195 = arith.mulf %194, %193 : vector<16x64xf32>
    %cst_66 = arith.constant 0.707106769 : f32
    %196 = vector.broadcast %cst_66 : f32 to vector<16x64xf32>
    %197 = arith.mulf %193, %196 : vector<16x64xf32>
    %cst_67 = arith.constant 0.000000e+00 : f32
    %198 = vector.broadcast %cst_67 : f32 to vector<16x64xf32>
    %199 = arith.cmpf oge, %197, %198 : vector<16x64xf32>
    %cst_68 = arith.constant 1.000000e+00 : f32
    %cst_69 = arith.constant -1.000000e+00 : f32
    %200 = vector.broadcast %cst_68 : f32 to vector<16x64xf32>
    %201 = vector.broadcast %cst_69 : f32 to vector<16x64xf32>
    %202 = arith.select %199, %200, %201 : vector<16x64xi1>, vector<16x64xf32>
    %203 = math.absf %197 : vector<16x64xf32>
    %cst_70 = arith.constant 0.327591091 : f32
    %204 = vector.broadcast %cst_70 : f32 to vector<16x64xf32>
    %205 = arith.mulf %204, %203 : vector<16x64xf32>
    %cst_71 = arith.constant 1.000000e+00 : f32
    %206 = vector.broadcast %cst_71 : f32 to vector<16x64xf32>
    %207 = arith.addf %206, %205 : vector<16x64xf32>
    %cst_72 = arith.constant 1.000000e+00 : f32
    %208 = vector.broadcast %cst_72 : f32 to vector<16x64xf32>
    %209 = arith.divf %208, %207 : vector<16x64xf32>
    %cst_73 = arith.constant 1.06140542 : f32
    %210 = vector.broadcast %cst_73 : f32 to vector<16x64xf32>
    %211 = arith.mulf %210, %209 : vector<16x64xf32>
    %cst_74 = arith.constant -1.45315206 : f32
    %212 = vector.broadcast %cst_74 : f32 to vector<16x64xf32>
    %213 = arith.addf %211, %212 : vector<16x64xf32>
    %214 = arith.mulf %213, %209 : vector<16x64xf32>
    %cst_75 = arith.constant 1.42141378 : f32
    %215 = vector.broadcast %cst_75 : f32 to vector<16x64xf32>
    %216 = arith.addf %214, %215 : vector<16x64xf32>
    %217 = arith.mulf %216, %209 : vector<16x64xf32>
    %cst_76 = arith.constant -0.284496725 : f32
    %218 = vector.broadcast %cst_76 : f32 to vector<16x64xf32>
    %219 = arith.addf %217, %218 : vector<16x64xf32>
    %220 = arith.mulf %219, %209 : vector<16x64xf32>
    %cst_77 = arith.constant 0.254829586 : f32
    %221 = vector.broadcast %cst_77 : f32 to vector<16x64xf32>
    %222 = arith.addf %220, %221 : vector<16x64xf32>
    %223 = arith.mulf %222, %209 : vector<16x64xf32>
    %cst_78 = arith.constant 0.000000e+00 : f32
    %224 = vector.broadcast %cst_78 : f32 to vector<16x64xf32>
    %225 = arith.subf %224, %203 : vector<16x64xf32>
    %226 = arith.mulf %225, %203 : vector<16x64xf32>
    %227 = math.exp %226 : vector<16x64xf32>
    %228 = arith.mulf %223, %227 : vector<16x64xf32>
    %cst_79 = arith.constant 1.000000e+00 : f32
    %229 = vector.broadcast %cst_79 : f32 to vector<16x64xf32>
    %230 = arith.subf %229, %228 : vector<16x64xf32>
    %231 = arith.mulf %202, %230 : vector<16x64xf32>
    %cst_80 = arith.constant 1.000000e+00 : f32
    %232 = vector.broadcast %cst_80 : f32 to vector<16x64xf32>
    %233 = arith.addf %232, %231 : vector<16x64xf32>
    %234 = arith.mulf %195, %233 : vector<16x64xf32>
    %c0_81 = arith.constant 0 : index
    %c0_82 = arith.constant 0 : index
    %c0_83 = arith.constant 0 : index
    %235 = vector.load %arg13[%c0_81, %c0_82, %c0_83] : memref<2x64x32xf32, #tpu.memory_space<vmem>>, vector<1x64x32xf32>
    %236 = vector.shape_cast %235 : vector<1x64x32xf32> to vector<64x32xf32>
    %237 = arith.truncf %234 : vector<16x64xf32> to vector<16x64xbf16>
    %238 = arith.truncf %236 : vector<64x32xf32> to vector<64x32xbf16>
    %cst_84 = arith.constant dense<0.000000e+00> : vector<16x32xf32>
    %239 = tpu.matmul %237, %238, %cst_84 {dimension_numbers = #tpu.dot_dimension_numbers<[1], [0], [0], [1], [0, 0, 1, 1], [], []>} : vector<16x64xbf16>, vector<64x32xbf16>, vector<16x32xf32> -> vector<16x32xf32>
    %c0_85 = arith.constant 0 : index
    %c0_86 = arith.constant 0 : index
    %c0_87 = arith.constant 0 : index
    %240 = vector.load %arg14[%c0_85, %c0_86, %c0_87] : memref<2x1x32xf32, #tpu.memory_space<vmem>>, vector<1x1x32xf32>
    %241 = vector.shape_cast %240 : vector<1x1x32xf32> to vector<1x32xf32>
    %242 = vector.broadcast %241 : vector<1x32xf32> to vector<16x32xf32>
    %243 = arith.addf %239, %242 : vector<16x32xf32>
    %244 = arith.addf %184, %243 : vector<16x32xf32>
    %c0_88 = arith.constant 0 : index
    %c0_89 = arith.constant 0 : index
    %c0_90 = arith.constant 0 : index
    %245 = vector.load %arg15[%c0_88, %c0_89, %c0_90] : memref<2x1x32xf32, #tpu.memory_space<vmem>>, vector<1x1x32xf32>
    %246 = vector.shape_cast %245 : vector<1x1x32xf32> to vector<1x32xf32>
    %c0_91 = arith.constant 0 : index
    %c0_92 = arith.constant 0 : index
    %c0_93 = arith.constant 0 : index
    %247 = vector.load %arg16[%c0_91, %c0_92, %c0_93] : memref<2x1x32xf32, #tpu.memory_space<vmem>>, vector<1x1x32xf32>
    %248 = vector.shape_cast %247 : vector<1x1x32xf32> to vector<1x32xf32>
    %cst_94 = arith.constant dense<0.000000e+00> : vector<16xf32>
    %249 = vector.multi_reduction <add>, %244, %cst_94 [1] : vector<16x32xf32> to vector<16xf32>
    %250 = vector.shape_cast %249 : vector<16xf32> to vector<16x1xf32>
    %cst_95 = arith.constant 3.200000e+01 : f32
    %251 = vector.broadcast %cst_95 : f32 to vector<16x1xf32>
    %252 = arith.divf %250, %251 : vector<16x1xf32>
    %253 = vector.broadcast %252 : vector<16x1xf32> to vector<16x32xf32>
    %254 = arith.subf %244, %253 : vector<16x32xf32>
    %255 = arith.mulf %254, %254 : vector<16x32xf32>
    %cst_96 = arith.constant dense<0.000000e+00> : vector<16xf32>
    %256 = vector.multi_reduction <add>, %255, %cst_96 [1] : vector<16x32xf32> to vector<16xf32>
    %257 = vector.shape_cast %256 : vector<16xf32> to vector<16x1xf32>
    %cst_97 = arith.constant 3.200000e+01 : f32
    %258 = vector.broadcast %cst_97 : f32 to vector<16x1xf32>
    %259 = arith.divf %257, %258 : vector<16x1xf32>
    %260 = vector.broadcast %252 : vector<16x1xf32> to vector<16x32xf32>
    %261 = arith.subf %244, %260 : vector<16x32xf32>
    %cst_98 = arith.constant 9.99999996E-13 : f32
    %262 = vector.broadcast %cst_98 : f32 to vector<16x1xf32>
    %263 = arith.addf %259, %262 : vector<16x1xf32>
    %264 = math.rsqrt %263 : vector<16x1xf32>
    %265 = vector.broadcast %264 : vector<16x1xf32> to vector<16x32xf32>
    %266 = arith.mulf %261, %265 : vector<16x32xf32>
    %267 = vector.broadcast %246 : vector<1x32xf32> to vector<16x32xf32>
    %268 = arith.mulf %266, %267 : vector<16x32xf32>
    %269 = vector.broadcast %248 : vector<1x32xf32> to vector<16x32xf32>
    %270 = arith.addf %268, %269 : vector<16x32xf32>
    %c1 = arith.constant 1 : index
    %c0_99 = arith.constant 0 : index
    %c0_100 = arith.constant 0 : index
    %271 = vector.load %arg5[%c1, %c0_99, %c0_100] : memref<2x32x96xf32, #tpu.memory_space<vmem>>, vector<1x32x96xf32>
    %272 = vector.shape_cast %271 : vector<1x32x96xf32> to vector<32x96xf32>
    %273 = arith.truncf %270 : vector<16x32xf32> to vector<16x32xbf16>
    %274 = arith.truncf %272 : vector<32x96xf32> to vector<32x96xbf16>
    %cst_101 = arith.constant dense<0.000000e+00> : vector<16x96xf32>
    %275 = tpu.matmul %273, %274, %cst_101 {dimension_numbers = #tpu.dot_dimension_numbers<[1], [0], [0], [1], [0, 0, 1, 1], [], []>} : vector<16x32xbf16>, vector<32x96xbf16>, vector<16x96xf32> -> vector<16x96xf32>
    %c1_102 = arith.constant 1 : index
    %c0_103 = arith.constant 0 : index
    %c0_104 = arith.constant 0 : index
    %276 = vector.load %arg6[%c1_102, %c0_103, %c0_104] : memref<2x1x96xf32, #tpu.memory_space<vmem>>, vector<1x1x96xf32>
    %277 = vector.shape_cast %276 : vector<1x1x96xf32> to vector<1x96xf32>
    %278 = vector.broadcast %277 : vector<1x96xf32> to vector<16x96xf32>
    %279 = arith.addf %275, %278 : vector<16x96xf32>
    %280 = vector.extract_strided_slice %279 {offsets = [0, 0], sizes = [16, 8], strides = [1, 1]} : vector<16x96xf32> to vector<16x8xf32>
    %281 = vector.shape_cast %280 : vector<16x8xf32> to vector<2x8x8xf32>
    %282 = vector.extract_strided_slice %279 {offsets = [0, 32], sizes = [16, 8], strides = [1, 1]} : vector<16x96xf32> to vector<16x8xf32>
    %283 = vector.shape_cast %282 : vector<16x8xf32> to vector<2x8x8xf32>
    %284 = vector.extract_strided_slice %279 {offsets = [0, 64], sizes = [16, 8], strides = [1, 1]} : vector<16x96xf32> to vector<16x8xf32>
    %285 = vector.shape_cast %284 : vector<16x8xf32> to vector<2x8x8xf32>
    %286 = arith.truncf %281 : vector<2x8x8xf32> to vector<2x8x8xbf16>
    %287 = arith.truncf %283 : vector<2x8x8xf32> to vector<2x8x8xbf16>
    "tpu.trace_start"() <{level = 10 : i32, message = "bqd,bkd->bqk"}> : () -> ()
    %cst_105 = arith.constant dense<0.000000e+00> : vector<2x8x8xf32>
    %288 = tpu.matmul %286, %287, %cst_105 {dimension_numbers = #tpu.dot_dimension_numbers<[2], [2], [1], [1], [0, 0, 0, 1, 1, 1], [0], [0]>} : vector<2x8x8xbf16>, vector<2x8x8xbf16>, vector<2x8x8xf32> -> vector<2x8x8xf32>
    "tpu.trace_stop"() : () -> ()
    %cst_106 = arith.constant 0.353553385 : f32
    %289 = vector.broadcast %cst_106 : f32 to vector<2x8x8xf32>
    %290 = arith.mulf %288, %289 : vector<2x8x8xf32>
    %291 = vector.broadcast %30 : vector<2x1x8xf32> to vector<2x8x8xf32>
    %292 = arith.addf %290, %291 : vector<2x8x8xf32>
    %cst_107 = arith.constant dense<0xFF800000> : vector<2x8xf32>
    %293 = vector.multi_reduction <maximumf>, %292, %cst_107 [2] : vector<2x8x8xf32> to vector<2x8xf32>
    %294 = vector.shape_cast %293 : vector<2x8xf32> to vector<2x8x1xf32>
    %295 = vector.broadcast %294 : vector<2x8x1xf32> to vector<2x8x8xf32>
    %296 = arith.subf %292, %295 : vector<2x8x8xf32>
    %297 = math.exp %296 : vector<2x8x8xf32>
    %cst_108 = arith.constant dense<0.000000e+00> : vector<2x8xf32>
    %298 = vector.multi_reduction <add>, %297, %cst_108 [2] : vector<2x8x8xf32> to vector<2x8xf32>
    %299 = vector.shape_cast %298 : vector<2x8xf32> to vector<2x8x1xf32>
    %300 = tpu.reciprocal %299 {approx = true} : vector<2x8x1xf32> -> vector<2x8x1xf32>
    %301 = vector.broadcast %300 : vector<2x8x1xf32> to vector<2x8x8xf32>
    %302 = arith.mulf %297, %301 : vector<2x8x8xf32>
    %303 = arith.truncf %302 : vector<2x8x8xf32> to vector<2x8x8xbf16>
    %304 = arith.truncf %285 : vector<2x8x8xf32> to vector<2x8x8xbf16>
    "tpu.trace_start"() <{level = 10 : i32, message = "bqk,bkd->bqd"}> : () -> ()
    %cst_109 = arith.constant dense<0.000000e+00> : vector<2x8x8xf32>
    %305 = tpu.matmul %303, %304, %cst_109 {dimension_numbers = #tpu.dot_dimension_numbers<[2], [1], [1], [2], [0, 0, 0, 1, 1, 2], [0], [0]>} : vector<2x8x8xbf16>, vector<2x8x8xbf16>, vector<2x8x8xf32> -> vector<2x8x8xf32>
    "tpu.trace_stop"() : () -> ()
    %306 = vector.shape_cast %305 : vector<2x8x8xf32> to vector<16x8xf32>
    %307 = vector.extract_strided_slice %279 {offsets = [0, 8], sizes = [16, 8], strides = [1, 1]} : vector<16x96xf32> to vector<16x8xf32>
    %308 = vector.shape_cast %307 : vector<16x8xf32> to vector<2x8x8xf32>
    %309 = vector.extract_strided_slice %279 {offsets = [0, 40], sizes = [16, 8], strides = [1, 1]} : vector<16x96xf32> to vector<16x8xf32>
    %310 = vector.shape_cast %309 : vector<16x8xf32> to vector<2x8x8xf32>
    %311 = vector.extract_strided_slice %279 {offsets = [0, 72], sizes = [16, 8], strides = [1, 1]} : vector<16x96xf32> to vector<16x8xf32>
    %312 = vector.shape_cast %311 : vector<16x8xf32> to vector<2x8x8xf32>
    %313 = arith.truncf %308 : vector<2x8x8xf32> to vector<2x8x8xbf16>
    %314 = arith.truncf %310 : vector<2x8x8xf32> to vector<2x8x8xbf16>
    "tpu.trace_start"() <{level = 10 : i32, message = "bqd,bkd->bqk"}> : () -> ()
    %cst_110 = arith.constant dense<0.000000e+00> : vector<2x8x8xf32>
    %315 = tpu.matmul %313, %314, %cst_110 {dimension_numbers = #tpu.dot_dimension_numbers<[2], [2], [1], [1], [0, 0, 0, 1, 1, 1], [0], [0]>} : vector<2x8x8xbf16>, vector<2x8x8xbf16>, vector<2x8x8xf32> -> vector<2x8x8xf32>
    "tpu.trace_stop"() : () -> ()
    %cst_111 = arith.constant 0.353553385 : f32
    %316 = vector.broadcast %cst_111 : f32 to vector<2x8x8xf32>
    %317 = arith.mulf %315, %316 : vector<2x8x8xf32>
    %318 = vector.broadcast %30 : vector<2x1x8xf32> to vector<2x8x8xf32>
    %319 = arith.addf %317, %318 : vector<2x8x8xf32>
    %cst_112 = arith.constant dense<0xFF800000> : vector<2x8xf32>
    %320 = vector.multi_reduction <maximumf>, %319, %cst_112 [2] : vector<2x8x8xf32> to vector<2x8xf32>
    %321 = vector.shape_cast %320 : vector<2x8xf32> to vector<2x8x1xf32>
    %322 = vector.broadcast %321 : vector<2x8x1xf32> to vector<2x8x8xf32>
    %323 = arith.subf %319, %322 : vector<2x8x8xf32>
    %324 = math.exp %323 : vector<2x8x8xf32>
    %cst_113 = arith.constant dense<0.000000e+00> : vector<2x8xf32>
    %325 = vector.multi_reduction <add>, %324, %cst_113 [2] : vector<2x8x8xf32> to vector<2x8xf32>
    %326 = vector.shape_cast %325 : vector<2x8xf32> to vector<2x8x1xf32>
    %327 = tpu.reciprocal %326 {approx = true} : vector<2x8x1xf32> -> vector<2x8x1xf32>
    %328 = vector.broadcast %327 : vector<2x8x1xf32> to vector<2x8x8xf32>
    %329 = arith.mulf %324, %328 : vector<2x8x8xf32>
    %330 = arith.truncf %329 : vector<2x8x8xf32> to vector<2x8x8xbf16>
    %331 = arith.truncf %312 : vector<2x8x8xf32> to vector<2x8x8xbf16>
    "tpu.trace_start"() <{level = 10 : i32, message = "bqk,bkd->bqd"}> : () -> ()
    %cst_114 = arith.constant dense<0.000000e+00> : vector<2x8x8xf32>
    %332 = tpu.matmul %330, %331, %cst_114 {dimension_numbers = #tpu.dot_dimension_numbers<[2], [1], [1], [2], [0, 0, 0, 1, 1, 2], [0], [0]>} : vector<2x8x8xbf16>, vector<2x8x8xbf16>, vector<2x8x8xf32> -> vector<2x8x8xf32>
    "tpu.trace_stop"() : () -> ()
    %333 = vector.shape_cast %332 : vector<2x8x8xf32> to vector<16x8xf32>
    %334 = vector.extract_strided_slice %279 {offsets = [0, 16], sizes = [16, 8], strides = [1, 1]} : vector<16x96xf32> to vector<16x8xf32>
    %335 = vector.shape_cast %334 : vector<16x8xf32> to vector<2x8x8xf32>
    %336 = vector.extract_strided_slice %279 {offsets = [0, 48], sizes = [16, 8], strides = [1, 1]} : vector<16x96xf32> to vector<16x8xf32>
    %337 = vector.shape_cast %336 : vector<16x8xf32> to vector<2x8x8xf32>
    %338 = vector.extract_strided_slice %279 {offsets = [0, 80], sizes = [16, 8], strides = [1, 1]} : vector<16x96xf32> to vector<16x8xf32>
    %339 = vector.shape_cast %338 : vector<16x8xf32> to vector<2x8x8xf32>
    %340 = arith.truncf %335 : vector<2x8x8xf32> to vector<2x8x8xbf16>
    %341 = arith.truncf %337 : vector<2x8x8xf32> to vector<2x8x8xbf16>
    "tpu.trace_start"() <{level = 10 : i32, message = "bqd,bkd->bqk"}> : () -> ()
    %cst_115 = arith.constant dense<0.000000e+00> : vector<2x8x8xf32>
    %342 = tpu.matmul %340, %341, %cst_115 {dimension_numbers = #tpu.dot_dimension_numbers<[2], [2], [1], [1], [0, 0, 0, 1, 1, 1], [0], [0]>} : vector<2x8x8xbf16>, vector<2x8x8xbf16>, vector<2x8x8xf32> -> vector<2x8x8xf32>
    "tpu.trace_stop"() : () -> ()
    %cst_116 = arith.constant 0.353553385 : f32
    %343 = vector.broadcast %cst_116 : f32 to vector<2x8x8xf32>
    %344 = arith.mulf %342, %343 : vector<2x8x8xf32>
    %345 = vector.broadcast %30 : vector<2x1x8xf32> to vector<2x8x8xf32>
    %346 = arith.addf %344, %345 : vector<2x8x8xf32>
    %cst_117 = arith.constant dense<0xFF800000> : vector<2x8xf32>
    %347 = vector.multi_reduction <maximumf>, %346, %cst_117 [2] : vector<2x8x8xf32> to vector<2x8xf32>
    %348 = vector.shape_cast %347 : vector<2x8xf32> to vector<2x8x1xf32>
    %349 = vector.broadcast %348 : vector<2x8x1xf32> to vector<2x8x8xf32>
    %350 = arith.subf %346, %349 : vector<2x8x8xf32>
    %351 = math.exp %350 : vector<2x8x8xf32>
    %cst_118 = arith.constant dense<0.000000e+00> : vector<2x8xf32>
    %352 = vector.multi_reduction <add>, %351, %cst_118 [2] : vector<2x8x8xf32> to vector<2x8xf32>
    %353 = vector.shape_cast %352 : vector<2x8xf32> to vector<2x8x1xf32>
    %354 = tpu.reciprocal %353 {approx = true} : vector<2x8x1xf32> -> vector<2x8x1xf32>
    %355 = vector.broadcast %354 : vector<2x8x1xf32> to vector<2x8x8xf32>
    %356 = arith.mulf %351, %355 : vector<2x8x8xf32>
    %357 = arith.truncf %356 : vector<2x8x8xf32> to vector<2x8x8xbf16>
    %358 = arith.truncf %339 : vector<2x8x8xf32> to vector<2x8x8xbf16>
    "tpu.trace_start"() <{level = 10 : i32, message = "bqk,bkd->bqd"}> : () -> ()
    %cst_119 = arith.constant dense<0.000000e+00> : vector<2x8x8xf32>
    %359 = tpu.matmul %357, %358, %cst_119 {dimension_numbers = #tpu.dot_dimension_numbers<[2], [1], [1], [2], [0, 0, 0, 1, 1, 2], [0], [0]>} : vector<2x8x8xbf16>, vector<2x8x8xbf16>, vector<2x8x8xf32> -> vector<2x8x8xf32>
    "tpu.trace_stop"() : () -> ()
    %360 = vector.shape_cast %359 : vector<2x8x8xf32> to vector<16x8xf32>
    %361 = vector.extract_strided_slice %279 {offsets = [0, 24], sizes = [16, 8], strides = [1, 1]} : vector<16x96xf32> to vector<16x8xf32>
    %362 = vector.shape_cast %361 : vector<16x8xf32> to vector<2x8x8xf32>
    %363 = vector.extract_strided_slice %279 {offsets = [0, 56], sizes = [16, 8], strides = [1, 1]} : vector<16x96xf32> to vector<16x8xf32>
    %364 = vector.shape_cast %363 : vector<16x8xf32> to vector<2x8x8xf32>
    %365 = vector.extract_strided_slice %279 {offsets = [0, 88], sizes = [16, 8], strides = [1, 1]} : vector<16x96xf32> to vector<16x8xf32>
    %366 = vector.shape_cast %365 : vector<16x8xf32> to vector<2x8x8xf32>
    %367 = arith.truncf %362 : vector<2x8x8xf32> to vector<2x8x8xbf16>
    %368 = arith.truncf %364 : vector<2x8x8xf32> to vector<2x8x8xbf16>
    "tpu.trace_start"() <{level = 10 : i32, message = "bqd,bkd->bqk"}> : () -> ()
    %cst_120 = arith.constant dense<0.000000e+00> : vector<2x8x8xf32>
    %369 = tpu.matmul %367, %368, %cst_120 {dimension_numbers = #tpu.dot_dimension_numbers<[2], [2], [1], [1], [0, 0, 0, 1, 1, 1], [0], [0]>} : vector<2x8x8xbf16>, vector<2x8x8xbf16>, vector<2x8x8xf32> -> vector<2x8x8xf32>
    "tpu.trace_stop"() : () -> ()
    %cst_121 = arith.constant 0.353553385 : f32
    %370 = vector.broadcast %cst_121 : f32 to vector<2x8x8xf32>
    %371 = arith.mulf %369, %370 : vector<2x8x8xf32>
    %372 = vector.broadcast %30 : vector<2x1x8xf32> to vector<2x8x8xf32>
    %373 = arith.addf %371, %372 : vector<2x8x8xf32>
    %cst_122 = arith.constant dense<0xFF800000> : vector<2x8xf32>
    %374 = vector.multi_reduction <maximumf>, %373, %cst_122 [2] : vector<2x8x8xf32> to vector<2x8xf32>
    %375 = vector.shape_cast %374 : vector<2x8xf32> to vector<2x8x1xf32>
    %376 = vector.broadcast %375 : vector<2x8x1xf32> to vector<2x8x8xf32>
    %377 = arith.subf %373, %376 : vector<2x8x8xf32>
    %378 = math.exp %377 : vector<2x8x8xf32>
    %cst_123 = arith.constant dense<0.000000e+00> : vector<2x8xf32>
    %379 = vector.multi_reduction <add>, %378, %cst_123 [2] : vector<2x8x8xf32> to vector<2x8xf32>
    %380 = vector.shape_cast %379 : vector<2x8xf32> to vector<2x8x1xf32>
    %381 = tpu.reciprocal %380 {approx = true} : vector<2x8x1xf32> -> vector<2x8x1xf32>
    %382 = vector.broadcast %381 : vector<2x8x1xf32> to vector<2x8x8xf32>
    %383 = arith.mulf %378, %382 : vector<2x8x8xf32>
    %384 = arith.truncf %383 : vector<2x8x8xf32> to vector<2x8x8xbf16>
    %385 = arith.truncf %366 : vector<2x8x8xf32> to vector<2x8x8xbf16>
    "tpu.trace_start"() <{level = 10 : i32, message = "bqk,bkd->bqd"}> : () -> ()
    %cst_124 = arith.constant dense<0.000000e+00> : vector<2x8x8xf32>
    %386 = tpu.matmul %384, %385, %cst_124 {dimension_numbers = #tpu.dot_dimension_numbers<[2], [1], [1], [2], [0, 0, 0, 1, 1, 2], [0], [0]>} : vector<2x8x8xbf16>, vector<2x8x8xbf16>, vector<2x8x8xf32> -> vector<2x8x8xf32>
    "tpu.trace_stop"() : () -> ()
    %387 = vector.shape_cast %386 : vector<2x8x8xf32> to vector<16x8xf32>
    %388 = tpu.concatenate %306, %333, %360, %387 in 1 : vector<16x8xf32>, vector<16x8xf32>, vector<16x8xf32>, vector<16x8xf32> -> vector<16x32xf32>
    %c1_125 = arith.constant 1 : index
    %c0_126 = arith.constant 0 : index
    %c0_127 = arith.constant 0 : index
    %389 = vector.load %arg7[%c1_125, %c0_126, %c0_127] : memref<2x32x32xf32, #tpu.memory_space<vmem>>, vector<1x32x32xf32>
    %390 = vector.shape_cast %389 : vector<1x32x32xf32> to vector<32x32xf32>
    %391 = arith.truncf %388 : vector<16x32xf32> to vector<16x32xbf16>
    %392 = arith.truncf %390 : vector<32x32xf32> to vector<32x32xbf16>
    %cst_128 = arith.constant dense<0.000000e+00> : vector<16x32xf32>
    %393 = tpu.matmul %391, %392, %cst_128 {dimension_numbers = #tpu.dot_dimension_numbers<[1], [0], [0], [1], [0, 0, 1, 1], [], []>} : vector<16x32xbf16>, vector<32x32xbf16>, vector<16x32xf32> -> vector<16x32xf32>
    %c1_129 = arith.constant 1 : index
    %c0_130 = arith.constant 0 : index
    %c0_131 = arith.constant 0 : index
    %394 = vector.load %arg8[%c1_129, %c0_130, %c0_131] : memref<2x1x32xf32, #tpu.memory_space<vmem>>, vector<1x1x32xf32>
    %395 = vector.shape_cast %394 : vector<1x1x32xf32> to vector<1x32xf32>
    %396 = vector.broadcast %395 : vector<1x32xf32> to vector<16x32xf32>
    %397 = arith.addf %393, %396 : vector<16x32xf32>
    %398 = arith.addf %270, %397 : vector<16x32xf32>
    %c1_132 = arith.constant 1 : index
    %c0_133 = arith.constant 0 : index
    %c0_134 = arith.constant 0 : index
    %399 = vector.load %arg9[%c1_132, %c0_133, %c0_134] : memref<2x1x32xf32, #tpu.memory_space<vmem>>, vector<1x1x32xf32>
    %400 = vector.shape_cast %399 : vector<1x1x32xf32> to vector<1x32xf32>
    %c1_135 = arith.constant 1 : index
    %c0_136 = arith.constant 0 : index
    %c0_137 = arith.constant 0 : index
    %401 = vector.load %arg10[%c1_135, %c0_136, %c0_137] : memref<2x1x32xf32, #tpu.memory_space<vmem>>, vector<1x1x32xf32>
    %402 = vector.shape_cast %401 : vector<1x1x32xf32> to vector<1x32xf32>
    %cst_138 = arith.constant dense<0.000000e+00> : vector<16xf32>
    %403 = vector.multi_reduction <add>, %398, %cst_138 [1] : vector<16x32xf32> to vector<16xf32>
    %404 = vector.shape_cast %403 : vector<16xf32> to vector<16x1xf32>
    %cst_139 = arith.constant 3.200000e+01 : f32
    %405 = vector.broadcast %cst_139 : f32 to vector<16x1xf32>
    %406 = arith.divf %404, %405 : vector<16x1xf32>
    %407 = vector.broadcast %406 : vector<16x1xf32> to vector<16x32xf32>
    %408 = arith.subf %398, %407 : vector<16x32xf32>
    %409 = arith.mulf %408, %408 : vector<16x32xf32>
    %cst_140 = arith.constant dense<0.000000e+00> : vector<16xf32>
    %410 = vector.multi_reduction <add>, %409, %cst_140 [1] : vector<16x32xf32> to vector<16xf32>
    %411 = vector.shape_cast %410 : vector<16xf32> to vector<16x1xf32>
    %cst_141 = arith.constant 3.200000e+01 : f32
    %412 = vector.broadcast %cst_141 : f32 to vector<16x1xf32>
    %413 = arith.divf %411, %412 : vector<16x1xf32>
    %414 = vector.broadcast %406 : vector<16x1xf32> to vector<16x32xf32>
    %415 = arith.subf %398, %414 : vector<16x32xf32>
    %cst_142 = arith.constant 9.99999996E-13 : f32
    %416 = vector.broadcast %cst_142 : f32 to vector<16x1xf32>
    %417 = arith.addf %413, %416 : vector<16x1xf32>
    %418 = math.rsqrt %417 : vector<16x1xf32>
    %419 = vector.broadcast %418 : vector<16x1xf32> to vector<16x32xf32>
    %420 = arith.mulf %415, %419 : vector<16x32xf32>
    %421 = vector.broadcast %400 : vector<1x32xf32> to vector<16x32xf32>
    %422 = arith.mulf %420, %421 : vector<16x32xf32>
    %423 = vector.broadcast %402 : vector<1x32xf32> to vector<16x32xf32>
    %424 = arith.addf %422, %423 : vector<16x32xf32>
    %c1_143 = arith.constant 1 : index
    %c0_144 = arith.constant 0 : index
    %c0_145 = arith.constant 0 : index
    %425 = vector.load %arg11[%c1_143, %c0_144, %c0_145] : memref<2x32x64xf32, #tpu.memory_space<vmem>>, vector<1x32x64xf32>
    %426 = vector.shape_cast %425 : vector<1x32x64xf32> to vector<32x64xf32>
    %427 = arith.truncf %424 : vector<16x32xf32> to vector<16x32xbf16>
    %428 = arith.truncf %426 : vector<32x64xf32> to vector<32x64xbf16>
    %cst_146 = arith.constant dense<0.000000e+00> : vector<16x64xf32>
    %429 = tpu.matmul %427, %428, %cst_146 {dimension_numbers = #tpu.dot_dimension_numbers<[1], [0], [0], [1], [0, 0, 1, 1], [], []>} : vector<16x32xbf16>, vector<32x64xbf16>, vector<16x64xf32> -> vector<16x64xf32>
    %c1_147 = arith.constant 1 : index
    %c0_148 = arith.constant 0 : index
    %c0_149 = arith.constant 0 : index
    %430 = vector.load %arg12[%c1_147, %c0_148, %c0_149] : memref<2x1x64xf32, #tpu.memory_space<vmem>>, vector<1x1x64xf32>
    %431 = vector.shape_cast %430 : vector<1x1x64xf32> to vector<1x64xf32>
    %432 = vector.broadcast %431 : vector<1x64xf32> to vector<16x64xf32>
    %433 = arith.addf %429, %432 : vector<16x64xf32>
    %cst_150 = arith.constant 5.000000e-01 : f32
    %434 = vector.broadcast %cst_150 : f32 to vector<16x64xf32>
    %435 = arith.mulf %434, %433 : vector<16x64xf32>
    %cst_151 = arith.constant 0.707106769 : f32
    %436 = vector.broadcast %cst_151 : f32 to vector<16x64xf32>
    %437 = arith.mulf %433, %436 : vector<16x64xf32>
    %cst_152 = arith.constant 0.000000e+00 : f32
    %438 = vector.broadcast %cst_152 : f32 to vector<16x64xf32>
    %439 = arith.cmpf oge, %437, %438 : vector<16x64xf32>
    %cst_153 = arith.constant 1.000000e+00 : f32
    %cst_154 = arith.constant -1.000000e+00 : f32
    %440 = vector.broadcast %cst_153 : f32 to vector<16x64xf32>
    %441 = vector.broadcast %cst_154 : f32 to vector<16x64xf32>
    %442 = arith.select %439, %440, %441 : vector<16x64xi1>, vector<16x64xf32>
    %443 = math.absf %437 : vector<16x64xf32>
    %cst_155 = arith.constant 0.327591091 : f32
    %444 = vector.broadcast %cst_155 : f32 to vector<16x64xf32>
    %445 = arith.mulf %444, %443 : vector<16x64xf32>
    %cst_156 = arith.constant 1.000000e+00 : f32
    %446 = vector.broadcast %cst_156 : f32 to vector<16x64xf32>
    %447 = arith.addf %446, %445 : vector<16x64xf32>
    %cst_157 = arith.constant 1.000000e+00 : f32
    %448 = vector.broadcast %cst_157 : f32 to vector<16x64xf32>
    %449 = arith.divf %448, %447 : vector<16x64xf32>
    %cst_158 = arith.constant 1.06140542 : f32
    %450 = vector.broadcast %cst_158 : f32 to vector<16x64xf32>
    %451 = arith.mulf %450, %449 : vector<16x64xf32>
    %cst_159 = arith.constant -1.45315206 : f32
    %452 = vector.broadcast %cst_159 : f32 to vector<16x64xf32>
    %453 = arith.addf %451, %452 : vector<16x64xf32>
    %454 = arith.mulf %453, %449 : vector<16x64xf32>
    %cst_160 = arith.constant 1.42141378 : f32
    %455 = vector.broadcast %cst_160 : f32 to vector<16x64xf32>
    %456 = arith.addf %454, %455 : vector<16x64xf32>
    %457 = arith.mulf %456, %449 : vector<16x64xf32>
    %cst_161 = arith.constant -0.284496725 : f32
    %458 = vector.broadcast %cst_161 : f32 to vector<16x64xf32>
    %459 = arith.addf %457, %458 : vector<16x64xf32>
    %460 = arith.mulf %459, %449 : vector<16x64xf32>
    %cst_162 = arith.constant 0.254829586 : f32
    %461 = vector.broadcast %cst_162 : f32 to vector<16x64xf32>
    %462 = arith.addf %460, %461 : vector<16x64xf32>
    %463 = arith.mulf %462, %449 : vector<16x64xf32>
    %cst_163 = arith.constant 0.000000e+00 : f32
    %464 = vector.broadcast %cst_163 : f32 to vector<16x64xf32>
    %465 = arith.subf %464, %443 : vector<16x64xf32>
    %466 = arith.mulf %465, %443 : vector<16x64xf32>
    %467 = math.exp %466 : vector<16x64xf32>
    %468 = arith.mulf %463, %467 : vector<16x64xf32>
    %cst_164 = arith.constant 1.000000e+00 : f32
    %469 = vector.broadcast %cst_164 : f32 to vector<16x64xf32>
    %470 = arith.subf %469, %468 : vector<16x64xf32>
    %471 = arith.mulf %442, %470 : vector<16x64xf32>
    %cst_165 = arith.constant 1.000000e+00 : f32
    %472 = vector.broadcast %cst_165 : f32 to vector<16x64xf32>
    %473 = arith.addf %472, %471 : vector<16x64xf32>
    %474 = arith.mulf %435, %473 : vector<16x64xf32>
    %c1_166 = arith.constant 1 : index
    %c0_167 = arith.constant 0 : index
    %c0_168 = arith.constant 0 : index
    %475 = vector.load %arg13[%c1_166, %c0_167, %c0_168] : memref<2x64x32xf32, #tpu.memory_space<vmem>>, vector<1x64x32xf32>
    %476 = vector.shape_cast %475 : vector<1x64x32xf32> to vector<64x32xf32>
    %477 = arith.truncf %474 : vector<16x64xf32> to vector<16x64xbf16>
    %478 = arith.truncf %476 : vector<64x32xf32> to vector<64x32xbf16>
    %cst_169 = arith.constant dense<0.000000e+00> : vector<16x32xf32>
    %479 = tpu.matmul %477, %478, %cst_169 {dimension_numbers = #tpu.dot_dimension_numbers<[1], [0], [0], [1], [0, 0, 1, 1], [], []>} : vector<16x64xbf16>, vector<64x32xbf16>, vector<16x32xf32> -> vector<16x32xf32>
    %c1_170 = arith.constant 1 : index
    %c0_171 = arith.constant 0 : index
    %c0_172 = arith.constant 0 : index
    %480 = vector.load %arg14[%c1_170, %c0_171, %c0_172] : memref<2x1x32xf32, #tpu.memory_space<vmem>>, vector<1x1x32xf32>
    %481 = vector.shape_cast %480 : vector<1x1x32xf32> to vector<1x32xf32>
    %482 = vector.broadcast %481 : vector<1x32xf32> to vector<16x32xf32>
    %483 = arith.addf %479, %482 : vector<16x32xf32>
    %484 = arith.addf %424, %483 : vector<16x32xf32>
    %c1_173 = arith.constant 1 : index
    %c0_174 = arith.constant 0 : index
    %c0_175 = arith.constant 0 : index
    %485 = vector.load %arg15[%c1_173, %c0_174, %c0_175] : memref<2x1x32xf32, #tpu.memory_space<vmem>>, vector<1x1x32xf32>
    %486 = vector.shape_cast %485 : vector<1x1x32xf32> to vector<1x32xf32>
    %c1_176 = arith.constant 1 : index
    %c0_177 = arith.constant 0 : index
    %c0_178 = arith.constant 0 : index
    %487 = vector.load %arg16[%c1_176, %c0_177, %c0_178] : memref<2x1x32xf32, #tpu.memory_space<vmem>>, vector<1x1x32xf32>
    %488 = vector.shape_cast %487 : vector<1x1x32xf32> to vector<1x32xf32>
    %cst_179 = arith.constant dense<0.000000e+00> : vector<16xf32>
    %489 = vector.multi_reduction <add>, %484, %cst_179 [1] : vector<16x32xf32> to vector<16xf32>
    %490 = vector.shape_cast %489 : vector<16xf32> to vector<16x1xf32>
    %cst_180 = arith.constant 3.200000e+01 : f32
    %491 = vector.broadcast %cst_180 : f32 to vector<16x1xf32>
    %492 = arith.divf %490, %491 : vector<16x1xf32>
    %493 = vector.broadcast %492 : vector<16x1xf32> to vector<16x32xf32>
    %494 = arith.subf %484, %493 : vector<16x32xf32>
    %495 = arith.mulf %494, %494 : vector<16x32xf32>
    %cst_181 = arith.constant dense<0.000000e+00> : vector<16xf32>
    %496 = vector.multi_reduction <add>, %495, %cst_181 [1] : vector<16x32xf32> to vector<16xf32>
    %497 = vector.shape_cast %496 : vector<16xf32> to vector<16x1xf32>
    %cst_182 = arith.constant 3.200000e+01 : f32
    %498 = vector.broadcast %cst_182 : f32 to vector<16x1xf32>
    %499 = arith.divf %497, %498 : vector<16x1xf32>
    %500 = vector.broadcast %492 : vector<16x1xf32> to vector<16x32xf32>
    %501 = arith.subf %484, %500 : vector<16x32xf32>
    %cst_183 = arith.constant 9.99999996E-13 : f32
    %502 = vector.broadcast %cst_183 : f32 to vector<16x1xf32>
    %503 = arith.addf %499, %502 : vector<16x1xf32>
    %504 = math.rsqrt %503 : vector<16x1xf32>
    %505 = vector.broadcast %504 : vector<16x1xf32> to vector<16x32xf32>
    %506 = arith.mulf %501, %505 : vector<16x32xf32>
    %507 = vector.broadcast %486 : vector<1x32xf32> to vector<16x32xf32>
    %508 = arith.mulf %506, %507 : vector<16x32xf32>
    %509 = vector.broadcast %488 : vector<1x32xf32> to vector<16x32xf32>
    %510 = arith.addf %508, %509 : vector<16x32xf32>
    %511 = vector.shape_cast %510 : vector<16x32xf32> to vector<2x8x32xf32>
    %512 = vector.extract_strided_slice %511 {offsets = [0, 0, 0], sizes = [2, 1, 32], strides = [1, 1, 1]} : vector<2x8x32xf32> to vector<2x1x32xf32>
    %513 = vector.shape_cast %512 : vector<2x1x32xf32> to vector<2x32xf32>
    %c0_184 = arith.constant 0 : index
    %c0_185 = arith.constant 0 : index
    %514 = vector.load %arg17[%c0_184, %c0_185] : memref<32x32xf32, #tpu.memory_space<vmem>>, vector<32x32xf32>
    %515 = arith.truncf %513 : vector<2x32xf32> to vector<2x32xbf16>
    %516 = arith.truncf %514 : vector<32x32xf32> to vector<32x32xbf16>
    %cst_186 = arith.constant dense<0.000000e+00> : vector<2x32xf32>
    %517 = tpu.matmul %515, %516, %cst_186 {dimension_numbers = #tpu.dot_dimension_numbers<[1], [0], [0], [1], [0, 0, 1, 1], [], []>} : vector<2x32xbf16>, vector<32x32xbf16>, vector<2x32xf32> -> vector<2x32xf32>
    %c0_187 = arith.constant 0 : index
    %c0_188 = arith.constant 0 : index
    %518 = vector.load %arg18[%c0_187, %c0_188] : memref<1x32xf32, #tpu.memory_space<vmem>>, vector<1x32xf32>
    %519 = vector.broadcast %518 : vector<1x32xf32> to vector<2x32xf32>
    %520 = arith.addf %517, %519 : vector<2x32xf32>
    %521 = math.tanh %520 : vector<2x32xf32>
    %c0_189 = arith.constant 0 : index
    %c0_190 = arith.constant 0 : index
    %522 = vector.load %arg19[%c0_189, %c0_190] : memref<32x3xf32, #tpu.memory_space<vmem>>, vector<32x3xf32>
    %523 = arith.truncf %521 : vector<2x32xf32> to vector<2x32xbf16>
    %524 = arith.truncf %522 : vector<32x3xf32> to vector<32x3xbf16>
    %cst_191 = arith.constant dense<0.000000e+00> : vector<2x3xf32>
    %525 = tpu.matmul %523, %524, %cst_191 {dimension_numbers = #tpu.dot_dimension_numbers<[1], [0], [0], [1], [0, 0, 1, 1], [], []>} : vector<2x32xbf16>, vector<32x3xbf16>, vector<2x3xf32> -> vector<2x3xf32>
    %c0_192 = arith.constant 0 : index
    %c0_193 = arith.constant 0 : index
    %526 = vector.load %arg20[%c0_192, %c0_193] : memref<1x3xf32, #tpu.memory_space<vmem>>, vector<1x3xf32>
    %527 = vector.broadcast %526 : vector<1x3xf32> to vector<2x3xf32>
    %528 = arith.addf %525, %527 : vector<2x3xf32>
    %c0_194 = arith.constant 0 : index
    %c0_195 = arith.constant 0 : index
    %529 = vector.load %arg22[%c0_194, %c0_195] : memref<2x3xf32, #tpu.memory_space<vmem>>, vector<2x3xf32>
    tpu.vector_store %arg22[%c0_194, %c0_195], %528 {strides = array<i32>} : memref<2x3xf32, #tpu.memory_space<vmem>>, vector<2x3xf32>,
    %cst_196 = arith.constant dense<0xFF800000> : vector<2xf32>
    %530 = vector.multi_reduction <maximumf>, %528, %cst_196 [1] : vector<2x3xf32> to vector<2xf32>
    %531 = vector.shape_cast %530 : vector<2xf32> to vector<2x1xf32>
    %532 = vector.broadcast %531 : vector<2x1xf32> to vector<2x3xf32>
    %533 = arith.subf %528, %532 : vector<2x3xf32>
    %534 = math.exp %533 : vector<2x3xf32>
    %cst_197 = arith.constant dense<0.000000e+00> : vector<2xf32>
    %535 = vector.multi_reduction <add>, %534, %cst_197 [1] : vector<2x3xf32> to vector<2xf32>
    %536 = vector.shape_cast %535 : vector<2xf32> to vector<2x1xf32>
    %537 = math.log %536 : vector<2x1xf32>
    %538 = vector.broadcast %537 : vector<2x1xf32> to vector<2x3xf32>
    %539 = arith.subf %533, %538 : vector<2x3xf32>
    %c0_198 = arith.constant 0 : index
    %c0_199 = arith.constant 0 : index
    %540 = vector.load %arg2[%c0_198, %c0_199] : memref<2x3xf32, #tpu.memory_space<vmem>>, vector<2x3xf32>
    %541 = arith.mulf %540, %539 : vector<2x3xf32>
    %cst_200 = arith.constant dense<0.000000e+00> : vector<2xf32>
    %542 = vector.multi_reduction <add>, %541, %cst_200 [1] : vector<2x3xf32> to vector<2xf32>
    %543 = vector.shape_cast %542 : vector<2xf32> to vector<2x1xf32>
    %cst_201 = arith.constant 0.000000e+00 : f32
    %544 = vector.broadcast %cst_201 : f32 to vector<2x1xf32>
    %545 = arith.subf %544, %543 : vector<2x1xf32>
    %cst_202 = arith.constant dense<0.000000e+00> : vector<1xf32>
    %546 = vector.multi_reduction <add>, %545, %cst_202 [0] : vector<2x1xf32> to vector<1xf32>
    %547 = vector.shape_cast %546 : vector<1xf32> to vector<1x1xf32>
    %cst_203 = arith.constant 5.000000e-01 : f32
    %548 = vector.broadcast %cst_203 : f32 to vector<1x1xf32>
    %549 = arith.mulf %547, %548 : vector<1x1xf32>
    %c0_204 = arith.constant 0 : index
    %c0_205 = arith.constant 0 : index
    %550 = vector.load %arg21[%c0_204, %c0_205] : memref<1x1xf32, #tpu.memory_space<vmem>>, vector<1x1xf32>
    tpu.vector_store %arg21[%c0_204, %c0_205], %549 {strides = array<i32>} : memref<1x1xf32, #tpu.memory_space<vmem>>, vector<1x1xf32>,
    return
  }
}

</mosaic_0001>

<llo_original>
// kernel: forward.1
$region0: #{forward.1}
  #allocation0 [shape = 'u32[]', space=smem, size = 0x4, offset = 0x4, fixed_abs, tag = 'smem constant byte address 0x4 - core index']
  #allocation1 [shape = 'u32[72,128]{1,0:T(1,128)}', space=vmem, size = 0x9000, scoped, tag = 'internal scratch']
  %s0 = inlined_call_operand.vmem [shape: f32[16,32], index: 0, kind: input, shape index: {}]
  %s1 = inlined_call_operand.vmem [shape: f32[2,8], index: 1, kind: input, shape index: {}]
  %s2 = inlined_call_operand.vmem [shape: f32[2,3], index: 2, kind: input, shape index: {}]
  %s3 = inlined_call_operand.vmem [shape: f32[1,32], index: 3, kind: input, shape index: {}]
  %s4 = inlined_call_operand.vmem [shape: f32[1,32], index: 4, kind: input, shape index: {}]
  %s5 = inlined_call_operand.vmem [shape: f32[2,32,96], index: 5, kind: input, shape index: {}]
  %s6 = inlined_call_operand.vmem [shape: f32[2,1,96], index: 6, kind: input, shape index: {}]
  %s7 = inlined_call_operand.vmem [shape: f32[2,32,32], index: 7, kind: input, shape index: {}]
  %s8 = inlined_call_operand.vmem [shape: f32[2,1,32], index: 8, kind: input, shape index: {}]
  %s9 = inlined_call_operand.vmem [shape: f32[2,1,32], index: 9, kind: input, shape index: {}]
  %s10 = inlined_call_operand.vmem [shape: f32[2,1,32], index: 10, kind: input, shape index: {}]
  %s11 = inlined_call_operand.vmem [shape: f32[2,32,64], index: 11, kind: input, shape index: {}]
  %s12 = inlined_call_operand.vmem [shape: f32[2,1,64], index: 12, kind: input, shape index: {}]
  %s13 = inlined_call_operand.vmem [shape: f32[2,64,32], index: 13, kind: input, shape index: {}]
  %s14 = inlined_call_operand.vmem [shape: f32[2,1,32], index: 14, kind: input, shape index: {}]
  %s15 = inlined_call_operand.vmem [shape: f32[2,1,32], index: 15, kind: input, shape index: {}]
  %s16 = inlined_call_operand.vmem [shape: f32[2,1,32], index: 16, kind: input, shape index: {}]
  %s17 = inlined_call_operand.vmem [shape: f32[32,32], index: 17, kind: input, shape index: {}]
  %s18 = inlined_call_operand.vmem [shape: f32[1,32], index: 18, kind: input, shape index: {}]
  %s19 = inlined_call_operand.vmem [shape: f32[32,3], index: 19, kind: input, shape index: {}]
  %s20 = inlined_call_operand.vmem [shape: f32[1,3], index: 20, kind: input, shape index: {}]
  %s21 = inlined_call_operand.hbm [shape: f32[1,1], index: 21, kind: output, shape index: {0}]
  %s22 = inlined_call_operand.hbm [shape: f32[2,3], index: 22, kind: output, shape index: {1}]
  %23 = xla_tuple %s21, %s22
  %s24 = sld [smem:[#allocation0]]
  $region102: #{forward.1} parent=0
    _
  %s26 = ssub.s32 1, %s24
  %s27 = scalar_select 0, %s26, %s24
  $region1: #{forward.1} parent=0
    #allocation2 [shape = 'u8[512]{0}', space=vmem, size = 0x400, scoped, tag = 'output window, operand 0, single buffered']
    #allocation3 [shape = 's32[1]{0}', space=sflag, size = 0x4, scoped, tag = 'scoped memory for forward.1']
    #allocation4 [shape = 'u8[1024]{0}', space=vmem, size = 0x400, scoped, tag = 'output window, operand 1, single buffered']
    #allocation5 [shape = 's32[1]{0}', space=sflag, size = 0x4, scoped, tag = 'scoped memory for forward.1']
    %28 = vsyncpa [#allocation3], 0
    %29 = vsyncpa [#allocation5], 0
    // Predicated region
    $region2: #{forward.1} parent=1 // pred_check
      _
    $region3: #{forward.1} parent=1 // pred_check_branch
      %31 = sbr.rel (0) target = $region5
    $region4: #{forward.1} parent=1 // pred_region
      _
    $region5: #{forward.1} parent=1 // pred_fallthru
      _
    // Predicated region
    $region6: #{forward.1} parent=1 // pred_check
      _
    $region7: #{forward.1} parent=1 // pred_check_branch
      %33 = sbr.rel (0) target = $region9
    $region8: #{forward.1} parent=1 // pred_region
      _
    $region9: #{forward.1} parent=1 // pred_fallthru
      _
    // Predicated region
    $region10: #{forward.1} parent=1 // pred_check
      _
    $region11: #{forward.1} parent=1 // pred_check_branch
      %35 = sbr.rel (0) target = $region13
    $region12: #{forward.1} parent=1 // pred_region
      _
    $region13: #{forward.1} parent=1 // pred_fallthru
      _
    // Predicated region
    $region14: #{forward.1} parent=1 // pred_check
      _
    $region15: #{forward.1} parent=1 // pred_check_branch
      %37 = sbr.rel (0) target = $region17
    $region16: #{forward.1} parent=1 // pred_region
      _
    $region17: #{forward.1} parent=1 // pred_fallthru
      _
    // Predicated region
    $region18: #{forward.1} parent=1 // pred_check
      _
    $region19: #{forward.1} parent=1 // pred_check_branch
      %39 = sbr.rel (0) target = $region21
    $region20: #{forward.1} parent=1 // pred_region
      _
    $region21: #{forward.1} parent=1 // pred_fallthru
      _
    // Predicated region
    $region22: #{forward.1} parent=1 // pred_check
      _
    $region23: #{forward.1} parent=1 // pred_check_branch
      %41 = sbr.rel (0) target = $region25
    $region24: #{forward.1} parent=1 // pred_region
      _
    $region25: #{forward.1} parent=1 // pred_fallthru
      _
    // Predicated region
    $region26: #{forward.1} parent=1 // pred_check
      _
    $region27: #{forward.1} parent=1 // pred_check_branch
      %43 = sbr.rel (0) target = $region29
    $region28: #{forward.1} parent=1 // pred_region
      _
    $region29: #{forward.1} parent=1 // pred_fallthru
      _
    // Predicated region
    $region30: #{forward.1} parent=1 // pred_check
      _
    $region31: #{forward.1} parent=1 // pred_check_branch
      %45 = sbr.rel (0) target = $region33
    $region32: #{forward.1} parent=1 // pred_region
      _
    $region33: #{forward.1} parent=1 // pred_fallthru
      _
    // Predicated region
    $region34: #{forward.1} parent=1 // pred_check
      _
    $region35: #{forward.1} parent=1 // pred_check_branch
      %47 = sbr.rel (0) target = $region37
    $region36: #{forward.1} parent=1 // pred_region
      _
    $region37: #{forward.1} parent=1 // pred_fallthru
      _
    // Predicated region
    $region38: #{forward.1} parent=1 // pred_check
      _
    $region39: #{forward.1} parent=1 // pred_check_branch
      %49 = sbr.rel (0) target = $region41
    $region40: #{forward.1} parent=1 // pred_region
      _
    $region41: #{forward.1} parent=1 // pred_fallthru
      _
    // Predicated region
    $region42: #{forward.1} parent=1 // pred_check
      _
    $region43: #{forward.1} parent=1 // pred_check_branch
      %51 = sbr.rel (0) target = $region45
    $region44: #{forward.1} parent=1 // pred_region
      _
    $region45: #{forward.1} parent=1 // pred_fallthru
      _
    // Predicated region
    $region46: #{forward.1} parent=1 // pred_check
      _
    $region47: #{forward.1} parent=1 // pred_check_branch
      %53 = sbr.rel (0) target = $region49
    $region48: #{forward.1} parent=1 // pred_region
      _
    $region49: #{forward.1} parent=1 // pred_fallthru
      _
    // Predicated region
    $region50: #{forward.1} parent=1 // pred_check
      _
    $region51: #{forward.1} parent=1 // pred_check_branch
      %55 = sbr.rel (0) target = $region53
    $region52: #{forward.1} parent=1 // pred_region
      _
    $region53: #{forward.1} parent=1 // pred_fallthru
      _
    // Predicated region
    $region54: #{forward.1} parent=1 // pred_check
      _
    $region55: #{forward.1} parent=1 // pred_check_branch
      %57 = sbr.rel (0) target = $region57
    $region56: #{forward.1} parent=1 // pred_region
      _
    $region57: #{forward.1} parent=1 // pred_fallthru
      _
    // Predicated region
    $region58: #{forward.1} parent=1 // pred_check
      _
    $region59: #{forward.1} parent=1 // pred_check_branch
      %59 = sbr.rel (0) target = $region61
    $region60: #{forward.1} parent=1 // pred_region
      _
    $region61: #{forward.1} parent=1 // pred_fallthru
      _
    // Predicated region
    $region62: #{forward.1} parent=1 // pred_check
      _
    $region63: #{forward.1} parent=1 // pred_check_branch
      %61 = sbr.rel (0) target = $region65
    $region64: #{forward.1} parent=1 // pred_region
      _
    $region65: #{forward.1} parent=1 // pred_fallthru
      _
    // Predicated region
    $region66: #{forward.1} parent=1 // pred_check
      _
    $region67: #{forward.1} parent=1 // pred_check_branch
      %63 = sbr.rel (0) target = $region69
    $region68: #{forward.1} parent=1 // pred_region
      _
    $region69: #{forward.1} parent=1 // pred_fallthru
      _
    // Predicated region
    $region70: #{forward.1} parent=1 // pred_check
      _
    $region71: #{forward.1} parent=1 // pred_check_branch
      %65 = sbr.rel (0) target = $region73
    $region72: #{forward.1} parent=1 // pred_region
      _
    $region73: #{forward.1} parent=1 // pred_fallthru
      _
    // Predicated region
    $region74: #{forward.1} parent=1 // pred_check
      _
    $region75: #{forward.1} parent=1 // pred_check_branch
      %67 = sbr.rel (0) target = $region77
    $region76: #{forward.1} parent=1 // pred_region
      _
    $region77: #{forward.1} parent=1 // pred_fallthru
      _
    // Predicated region
    $region78: #{forward.1} parent=1 // pred_check
      _
    $region79: #{forward.1} parent=1 // pred_check_branch
      %69 = sbr.rel (0) target = $region81
    $region80: #{forward.1} parent=1 // pred_region
      _
    $region81: #{forward.1} parent=1 // pred_fallthru
      _
    // Predicated region
    $region82: #{forward.1} parent=1 // pred_check
      _
    $region83: #{forward.1} parent=1 // pred_check_branch
      %71 = sbr.rel (0) target = $region85
    $region84: #{forward.1} parent=1 // pred_region
      _
    $region85: #{forward.1} parent=1 // pred_fallthru
      _
    %v73 = vld [vmem:[%s0] sm:$0xff]
    %v74 = vld [vmem:[%s0 + $0x8] sm:$0xff]
    %v75 = vld [vmem:[%s3] sm:$0x1]
    %v76 = vld [vmem:[%s4] sm:$0x1]
    %vm77 = vcmask 261120
    %v78 = vsel %vm77, %v73, 0.0
    %79 = vadd.xlane.f32.xlu0 %v78
    %v80 = vpop.xlane.xlu0 %79
    %v81 = vsel %vm77, %v74, 0.0
    %82 = vadd.xlane.f32.xlu0 %v81
    %v83 = vpop.xlane.xlu0 %82
    %v84 = vrcp.pop 32.0
    %v85 = vmul.f32 32.0, %v84
    %v86 = vsub.f32 1.0, %v85
    %v87 = vmul.f32 %v84, %v86
    %v88 = vadd.f32 %v84, %v87
    %vm89 = vweird.f32 %v84
    %v90 = vsel %vm89, %v84, %v88
    %v91 = vmul.f32 %v80, %v90
    %v92 = vmul.f32 %v83, %v90
    %v93 = vsub.f32 %v73, %v91
    %v94 = vsub.f32 %v74, %v92
    %v95 = vmul.f32 %v93, %v93
    %v96 = vmul.f32 %v94, %v94
    %v97 = vsel %vm77, %v95, 0.0
    %98 = vadd.xlane.f32.xlu0 %v97
    %v99 = vpop.xlane.xlu0 %98
    %v100 = vsel %vm77, %v96, 0.0
    %101 = vadd.xlane.f32.xlu0 %v100
    %v102 = vpop.xlane.xlu0 %101
    %v103 = vmul.f32 %v99, %v90
    %v104 = vmul.f32 %v102, %v90
    %v105 = vadd.f32 %v103, 1e-12
    %v106 = vadd.f32 %v104, 1e-12
    %v107 = vrsqrt.pop %v105
    %v108 = vmul.f32 %v107, %v105
    %v109 = vmul.f32 %v108, %v107
    %v110 = vmul.f32 0.5, %v109
    %v111 = vsub.f32 1.5, %v110
    %v112 = vmul.f32 %v107, %v111
    %vm113 = vweird.f32 %v105
    %vm114 = vweird.f32 %v107
    %vm115 = vmor %vm113, %vm114
    %v116 = vsel %vm115, %v107, %v112
    %v117 = vrsqrt.pop %v106
    %v118 = vmul.f32 %v117, %v106
    %v119 = vmul.f32 %v118, %v117
    %v120 = vmul.f32 0.5, %v119
    %v121 = vsub.f32 1.5, %v120
    %v122 = vmul.f32 %v117, %v121
    %vm123 = vweird.f32 %v106
    %vm124 = vweird.f32 %v117
    %vm125 = vmor %vm123, %vm124
    %v126 = vsel %vm125, %v117, %v122
    %v127 = vmul.f32 %v93, %v116
    %v128 = vmul.f32 %v94, %v126
    %v130 = vperm.slane %v75, 0
    %v132 = vmul.f32 %v127, %v130
    %v133 = vmul.f32 %v128, %v130
    %v135 = vperm.slane %v76, 0
    %v137 = vadd.f32 %v132, %v135
    %v138 = vadd.f32 %v133, %v135
    %v139 = vld [vmem:[%s1] sm:$0x3]
    %v140 = vsub.f32 1.0, %v139
    %v141 = vmul.f32 %v140, -1e+09
    %v143 = vrot.slane %v141, 1
    %v144 = vld [vmem:[%s5] sm:$0xff]
    %v145 = vld [vmem:[%s5 + $0x8] sm:$0xff]
    %v146 = vld [vmem:[%s5 + $0x10] sm:$0xff]
    %v147 = vld [vmem:[%s5 + $0x18] sm:$0xff]
    %v148 = vpack.c.bf16 %v138, %v137
    %v149 = vpack.c.bf16 %v145, %v144
    %v150 = vpack.c.bf16 %v147, %v146
    %v151 = vld [vmem:[%s6] sm:$0x1]
    %v153 = vperm.slane %v151, 0
    %v156 = vsel %vm77, %v148, 0
    %158 = vmatpush.bf16.msra.mxu0 0
    %159 = vmatpush.bf16.msra.mxu0 0
    %160 = vmatpush.bf16.msra.mxu0 0
    %161 = vmatpush.bf16.msra.mxu0 0
    %162 = vmatpush.bf16.msra.mxu0 0
    %163 = vmatpush.bf16.msra.mxu0 0
    %164 = vmatpush.bf16.msra.mxu0 %v150
    %165 = vmatpush.bf16.msra.mxu0 %v149
    %166 = vmatmul.bf16.gmra.mxu0 %v156
    %v167 = vpop.f32.mrf.mxu0
    %v168 = vadd.f32 %v153, %v167
    %v169 = vpop.f32.mrf.mxu0
    %v170 = vadd.f32 %v153, %v169
    %171 = vdwg.mxu0
    %v172 = vpack.c.bf16 %v168, %v168
    %v173 = vpack.c.bf16 %v170, %v170
    %v175 = vunpack.c.l.b16 %v172
    %v176 = vpack.c.b16 %v175, %v175
    %177 = vrot.lane.b32.xlu0 %v176, 96
    %v178 = vpop.permute.xlu0 %177
    %vm179 = vcmask 64512
    %v181 = vsel %vm179, %v172, 0
    %v184 = vsel %vm179, %v178, 0
    %186 = vmatpush.bf16.xpose.msra.mxu0 0
    %187 = vmatpush.bf16.xpose.msra.mxu0 0
    %188 = vmatpush.bf16.xpose.msra.mxu0 0
    %189 = vmatpush.bf16.xpose.msra.mxu0 0
    %190 = vmatpush.bf16.xpose.msra.mxu0 0
    %191 = vmatpush.bf16.xpose.msra.mxu0 0
    %192 = vmatpush.bf16.xpose.msra.mxu0 0
    %193 = vmatpush.bf16.xpose.msra.mxu0 %v184
    %194 = vmatmul.bf16.gmra.mxu0 %v181
    %v195 = vpop.f32.mrf.mxu0
    %v196 = vadd.f32 0.0, %v195
    %v197 = vpop.f32.mrf.mxu0
    %198 = vdwg.mxu0
    %v200 = vunpack.c.l.b16 %v173
    %v201 = vpack.c.b16 %v200, %v200
    %202 = vrot.lane.b32.xlu0 %v201, 96
    %v203 = vpop.permute.xlu0 %202
    %v205 = vsel %vm179, %v173, 0
    %v208 = vsel %vm179, %v203, 0
    %210 = vmatpush.bf16.xpose.msra.mxu0 0
    %211 = vmatpush.bf16.xpose.msra.mxu0 0
    %212 = vmatpush.bf16.xpose.msra.mxu0 0
    %213 = vmatpush.bf16.xpose.msra.mxu0 0
    %214 = vmatpush.bf16.xpose.msra.mxu0 0
    %215 = vmatpush.bf16.xpose.msra.mxu0 0
    %216 = vmatpush.bf16.xpose.msra.mxu0 0
    %217 = vmatpush.bf16.xpose.msra.mxu0 %v208
    %218 = vmatmul.bf16.gmra.mxu0 %v205
    %v219 = vpop.f32.mrf.mxu0
    %v220 = vadd.f32 0.0, %v219
    %v221 = vpop.f32.mrf.mxu0
    %222 = vdwg.mxu0
    %v223 = vmul.f32 %v196, 0.35355338
    %v224 = vmul.f32 %v220, 0.35355338
    %v225 = vperm.slane %v141, 0
    %v226 = vperm.slane %v143, 0
    %v229 = vadd.f32 %v223, %v225
    %v230 = vadd.f32 %v224, %v226
    %v231 = vsel %vm179, %v229, -inf
    %232 = vmax.xlane.f32.xlu0 %v231
    %v233 = vpop.xlane.xlu0 %232
    %v234 = vsel %vm179, %v230, -inf
    %235 = vmax.xlane.f32.xlu0 %v234
    %v236 = vpop.xlane.xlu0 %235
    %v237 = vsub.f32 %v229, %v233
    %v238 = vsub.f32 %v230, %v236
    %v239 = vmul.f32 %v237, 1.442695
    %v240 = vpow.pop %v239
    %v241 = vmul.f32 %v238, 1.442695
    %v242 = vpow.pop %v241
    %v243 = vsel %vm179, %v240, 0.0
    %244 = vadd.xlane.f32.xlu0 %v243
    %v245 = vpop.xlane.xlu0 %244
    %v246 = vsel %vm179, %v242, 0.0
    %247 = vadd.xlane.f32.xlu0 %v246
    %v248 = vpop.xlane.xlu0 %247
    %v249 = vrcp.pop %v245
    %v250 = vrcp.pop %v248
    %v251 = vmul.f32 %v240, %v249
    %v252 = vmul.f32 %v242, %v250
    %v253 = vpack.c.bf16 %v251, %v251
    %v254 = vpack.c.bf16 %v252, %v252
    %255 = vrot.lane.b32.xlu0 %v176, 64
    %v256 = vpop.permute.xlu0 %255
    %v258 = vsel %vm179, %v253, 0
    %vm260 = vcmask 1043456
    %v262 = vsel %vm260, %v256, 0
    %264 = vmatpush.bf16.msra.mxu0 0
    %265 = vmatpush.bf16.msra.mxu0 0
    %266 = vmatpush.bf16.msra.mxu0 0
    %267 = vmatpush.bf16.msra.mxu0 0
    %268 = vmatpush.bf16.msra.mxu0 0
    %269 = vmatpush.bf16.msra.mxu0 0
    %270 = vmatpush.bf16.msra.mxu0 0
    %271 = vmatpush.bf16.msra.mxu0 %v262
    %272 = vmatmul.bf16.gmra.mxu0 %v258
    %v273 = vpop.f32.mrf.mxu0
    %v274 = vadd.f32 0.0, %v273
    %v275 = vpop.f32.mrf.mxu0
    %276 = vdwg.mxu0
    %277 = vrot.lane.b32.xlu0 %v201, 64
    %v278 = vpop.permute.xlu0 %277
    %v280 = vsel %vm179, %v254, 0
    %v283 = vsel %vm260, %v278, 0
    %285 = vmatpush.bf16.msra.mxu0 0
    %286 = vmatpush.bf16.msra.mxu0 0
    %287 = vmatpush.bf16.msra.mxu0 0
    %288 = vmatpush.bf16.msra.mxu0 0
    %289 = vmatpush.bf16.msra.mxu0 0
    %290 = vmatpush.bf16.msra.mxu0 0
    %291 = vmatpush.bf16.msra.mxu0 0
    %292 = vmatpush.bf16.msra.mxu0 %v283
    %293 = vmatmul.bf16.gmra.mxu0 %v280
    %v294 = vpop.f32.mrf.mxu0
    %v295 = vadd.f32 0.0, %v294
    %v296 = vpop.f32.mrf.mxu0
    %297 = vdwg.mxu0
    %298 = vrot.lane.b32.xlu0 %v176, 120
    %v299 = vpop.permute.xlu0 %298
    %300 = vrot.lane.b32.xlu0 %v176, 88
    %v301 = vpop.permute.xlu0 %300
    %v303 = vsel %vm179, %v299, 0
    %v306 = vsel %vm179, %v301, 0
    %308 = vmatpush.bf16.xpose.msra.mxu0 0
    %309 = vmatpush.bf16.xpose.msra.mxu0 0
    %310 = vmatpush.bf16.xpose.msra.mxu0 0
    %311 = vmatpush.bf16.xpose.msra.mxu0 0
    %312 = vmatpush.bf16.xpose.msra.mxu0 0
    %313 = vmatpush.bf16.xpose.msra.mxu0 0
    %314 = vmatpush.bf16.xpose.msra.mxu0 0
    %315 = vmatpush.bf16.xpose.msra.mxu0 %v306
    %316 = vmatmul.bf16.gmra.mxu0 %v303
    %v317 = vpop.f32.mrf.mxu0
    %v318 = vadd.f32 0.0, %v317
    %v319 = vpop.f32.mrf.mxu0
    %320 = vdwg.mxu0
    %321 = vrot.lane.b32.xlu0 %v201, 120
    %v322 = vpop.permute.xlu0 %321
    %323 = vrot.lane.b32.xlu0 %v201, 88
    %v324 = vpop.permute.xlu0 %323
    %v326 = vsel %vm179, %v322, 0
    %v329 = vsel %vm179, %v324, 0
    %331 = vmatpush.bf16.xpose.msra.mxu0 0
    %332 = vmatpush.bf16.xpose.msra.mxu0 0
    %333 = vmatpush.bf16.xpose.msra.mxu0 0
    %334 = vmatpush.bf16.xpose.msra.mxu0 0
    %335 = vmatpush.bf16.xpose.msra.mxu0 0
    %336 = vmatpush.bf16.xpose.msra.mxu0 0
    %337 = vmatpush.bf16.xpose.msra.mxu0 0
    %338 = vmatpush.bf16.xpose.msra.mxu0 %v329
    %339 = vmatmul.bf16.gmra.mxu0 %v326
    %v340 = vpop.f32.mrf.mxu0
    %v341 = vadd.f32 0.0, %v340
    %v342 = vpop.f32.mrf.mxu0
    %343 = vdwg.mxu0
    %v344 = vmul.f32 %v318, 0.35355338
    %v345 = vmul.f32 %v341, 0.35355338
    %v346 = vadd.f32 %v344, %v225
    %v347 = vadd.f32 %v345, %v226
    %v348 = vsel %vm179, %v346, -inf
    %349 = vmax.xlane.f32.xlu0 %v348
    %v350 = vpop.xlane.xlu0 %349
    %v351 = vsel %vm179, %v347, -inf
    %352 = vmax.xlane.f32.xlu0 %v351
    %v353 = vpop.xlane.xlu0 %352
    %v354 = vsub.f32 %v346, %v350
    %v355 = vsub.f32 %v347, %v353
    %v356 = vmul.f32 %v354, 1.442695
    %v357 = vpow.pop %v356
    %v358 = vmul.f32 %v355, 1.442695
    %v359 = vpow.pop %v358
    %v360 = vsel %vm179, %v357, 0.0
    %361 = vadd.xlane.f32.xlu0 %v360
    %v362 = vpop.xlane.xlu0 %361
    %v363 = vsel %vm179, %v359, 0.0
    %364 = vadd.xlane.f32.xlu0 %v363
    %v365 = vpop.xlane.xlu0 %364
    %v366 = vrcp.pop %v362
    %v367 = vrcp.pop %v365
    %v368 = vmul.f32 %v357, %v366
    %v369 = vmul.f32 %v359, %v367
    %v370 = vpack.c.bf16 %v368, %v368
    %v371 = vpack.c.bf16 %v369, %v369
    %372 = vrot.lane.b32.xlu0 %v176, 56
    %v373 = vpop.permute.xlu0 %372
    %v375 = vsel %vm179, %v370, 0
    %v378 = vsel %vm260, %v373, 0
    %380 = vmatpush.bf16.msra.mxu0 0
    %381 = vmatpush.bf16.msra.mxu0 0
    %382 = vmatpush.bf16.msra.mxu0 0
    %383 = vmatpush.bf16.msra.mxu0 0
    %384 = vmatpush.bf16.msra.mxu0 0
    %385 = vmatpush.bf16.msra.mxu0 0
    %386 = vmatpush.bf16.msra.mxu0 0
    %387 = vmatpush.bf16.msra.mxu0 %v378
    %388 = vmatmul.bf16.gmra.mxu0 %v375
    %v389 = vpop.f32.mrf.mxu0
    %v390 = vadd.f32 0.0, %v389
    %v391 = vpop.f32.mrf.mxu0
    %392 = vdwg.mxu0
    %393 = vrot.lane.b32.xlu0 %v201, 56
    %v394 = vpop.permute.xlu0 %393
    %v396 = vsel %vm179, %v371, 0
    %v399 = vsel %vm260, %v394, 0
    %401 = vmatpush.bf16.msra.mxu0 0
    %402 = vmatpush.bf16.msra.mxu0 0
    %403 = vmatpush.bf16.msra.mxu0 0
    %404 = vmatpush.bf16.msra.mxu0 0
    %405 = vmatpush.bf16.msra.mxu0 0
    %406 = vmatpush.bf16.msra.mxu0 0
    %407 = vmatpush.bf16.msra.mxu0 0
    %408 = vmatpush.bf16.msra.mxu0 %v399
    %409 = vmatmul.bf16.gmra.mxu0 %v396
    %v410 = vpop.f32.mrf.mxu0
    %v411 = vadd.f32 0.0, %v410
    %v412 = vpop.f32.mrf.mxu0
    %413 = vdwg.mxu0
    %414 = vrot.lane.b32.xlu0 %v176, 112
    %v415 = vpop.permute.xlu0 %414
    %416 = vrot.lane.b32.xlu0 %v176, 80
    %v417 = vpop.permute.xlu0 %416
    %v419 = vsel %vm179, %v415, 0
    %v422 = vsel %vm179, %v417, 0
    %424 = vmatpush.bf16.xpose.msra.mxu0 0
    %425 = vmatpush.bf16.xpose.msra.mxu0 0
    %426 = vmatpush.bf16.xpose.msra.mxu0 0
    %427 = vmatpush.bf16.xpose.msra.mxu0 0
    %428 = vmatpush.bf16.xpose.msra.mxu0 0
    %429 = vmatpush.bf16.xpose.msra.mxu0 0
    %430 = vmatpush.bf16.xpose.msra.mxu0 0
    %431 = vmatpush.bf16.xpose.msra.mxu0 %v422
    %432 = vmatmul.bf16.gmra.mxu0 %v419
    %v433 = vpop.f32.mrf.mxu0
    %v434 = vadd.f32 0.0, %v433
    %v435 = vpop.f32.mrf.mxu0
    %436 = vdwg.mxu0
    %437 = vrot.lane.b32.xlu0 %v201, 112
    %v438 = vpop.permute.xlu0 %437
    %439 = vrot.lane.b32.xlu0 %v201, 80
    %v440 = vpop.permute.xlu0 %439
    %v442 = vsel %vm179, %v438, 0
    %v445 = vsel %vm179, %v440, 0
    %447 = vmatpush.bf16.xpose.msra.mxu0 0
    %448 = vmatpush.bf16.xpose.msra.mxu0 0
    %449 = vmatpush.bf16.xpose.msra.mxu0 0
    %450 = vmatpush.bf16.xpose.msra.mxu0 0
    %451 = vmatpush.bf16.xpose.msra.mxu0 0
    %452 = vmatpush.bf16.xpose.msra.mxu0 0
    %453 = vmatpush.bf16.xpose.msra.mxu0 0
    %454 = vmatpush.bf16.xpose.msra.mxu0 %v445
    %455 = vmatmul.bf16.gmra.mxu0 %v442
    %v456 = vpop.f32.mrf.mxu0
    %v457 = vadd.f32 0.0, %v456
    %v458 = vpop.f32.mrf.mxu0
    %459 = vdwg.mxu0
    %v460 = vmul.f32 %v434, 0.35355338
    %v461 = vmul.f32 %v457, 0.35355338
    %v462 = vadd.f32 %v460, %v225
    %v463 = vadd.f32 %v461, %v226
    %v464 = vsel %vm179, %v462, -inf
    %465 = vmax.xlane.f32.xlu0 %v464
    %v466 = vpop.xlane.xlu0 %465
    %v467 = vsel %vm179, %v463, -inf
    %468 = vmax.xlane.f32.xlu0 %v467
    %v469 = vpop.xlane.xlu0 %468
    %v470 = vsub.f32 %v462, %v466
    %v471 = vsub.f32 %v463, %v469
    %v472 = vmul.f32 %v470, 1.442695
    %v473 = vpow.pop %v472
    %v474 = vmul.f32 %v471, 1.442695
    %v475 = vpow.pop %v474
    %v476 = vsel %vm179, %v473, 0.0
    %477 = vadd.xlane.f32.xlu0 %v476
    %v478 = vpop.xlane.xlu0 %477
    %v479 = vsel %vm179, %v475, 0.0
    %480 = vadd.xlane.f32.xlu0 %v479
    %v481 = vpop.xlane.xlu0 %480
    %v482 = vrcp.pop %v478
    %v483 = vrcp.pop %v481
    %v484 = vmul.f32 %v473, %v482
    %v485 = vmul.f32 %v475, %v483
    %v486 = vpack.c.bf16 %v484, %v484
    %v487 = vpack.c.bf16 %v485, %v485
    %488 = vrot.lane.b32.xlu0 %v176, 48
    %v489 = vpop.permute.xlu0 %488
    %v491 = vsel %vm179, %v486, 0
    %v494 = vsel %vm260, %v489, 0
    %496 = vmatpush.bf16.msra.mxu0 0
    %497 = vmatpush.bf16.msra.mxu0 0
    %498 = vmatpush.bf16.msra.mxu0 0
    %499 = vmatpush.bf16.msra.mxu0 0
    %500 = vmatpush.bf16.msra.mxu0 0
    %501 = vmatpush.bf16.msra.mxu0 0
    %502 = vmatpush.bf16.msra.mxu0 0
    %503 = vmatpush.bf16.msra.mxu0 %v494
    %504 = vmatmul.bf16.gmra.mxu0 %v491
    %v505 = vpop.f32.mrf.mxu0
    %v506 = vadd.f32 0.0, %v505
    %v507 = vpop.f32.mrf.mxu0
    %508 = vdwg.mxu0
    %509 = vrot.lane.b32.xlu0 %v201, 48
    %v510 = vpop.permute.xlu0 %509
    %v512 = vsel %vm179, %v487, 0
    %v515 = vsel %vm260, %v510, 0
    %517 = vmatpush.bf16.msra.mxu0 0
    %518 = vmatpush.bf16.msra.mxu0 0
    %519 = vmatpush.bf16.msra.mxu0 0
    %520 = vmatpush.bf16.msra.mxu0 0
    %521 = vmatpush.bf16.msra.mxu0 0
    %522 = vmatpush.bf16.msra.mxu0 0
    %523 = vmatpush.bf16.msra.mxu0 0
    %524 = vmatpush.bf16.msra.mxu0 %v515
    %525 = vmatmul.bf16.gmra.mxu0 %v512
    %v526 = vpop.f32.mrf.mxu0
    %v527 = vadd.f32 0.0, %v526
    %v528 = vpop.f32.mrf.mxu0
    %529 = vdwg.mxu0
    %530 = vrot.lane.b32.xlu0 %v176, 104
    %v531 = vpop.permute.xlu0 %530
    %532 = vrot.lane.b32.xlu0 %v176, 72
    %v533 = vpop.permute.xlu0 %532
    %v535 = vsel %vm179, %v531, 0
    %v538 = vsel %vm179, %v533, 0
    %540 = vmatpush.bf16.xpose.msra.mxu0 0
    %541 = vmatpush.bf16.xpose.msra.mxu0 0
    %542 = vmatpush.bf16.xpose.msra.mxu0 0
    %543 = vmatpush.bf16.xpose.msra.mxu0 0
    %544 = vmatpush.bf16.xpose.msra.mxu0 0
    %545 = vmatpush.bf16.xpose.msra.mxu0 0
    %546 = vmatpush.bf16.xpose.msra.mxu0 0
    %547 = vmatpush.bf16.xpose.msra.mxu0 %v538
    %548 = vmatmul.bf16.gmra.mxu0 %v535
    %v549 = vpop.f32.mrf.mxu0
    %v550 = vadd.f32 0.0, %v549
    %v551 = vpop.f32.mrf.mxu0
    %552 = vdwg.mxu0
    %553 = vrot.lane.b32.xlu0 %v201, 104
    %v554 = vpop.permute.xlu0 %553
    %555 = vrot.lane.b32.xlu0 %v201, 72
    %v556 = vpop.permute.xlu0 %555
    %v558 = vsel %vm179, %v554, 0
    %v561 = vsel %vm179, %v556, 0
    %563 = vmatpush.bf16.xpose.msra.mxu0 0
    %564 = vmatpush.bf16.xpose.msra.mxu0 0
    %565 = vmatpush.bf16.xpose.msra.mxu0 0
    %566 = vmatpush.bf16.xpose.msra.mxu0 0
    %567 = vmatpush.bf16.xpose.msra.mxu0 0
    %568 = vmatpush.bf16.xpose.msra.mxu0 0
    %569 = vmatpush.bf16.xpose.msra.mxu0 0
    %570 = vmatpush.bf16.xpose.msra.mxu0 %v561
    %571 = vmatmul.bf16.gmra.mxu0 %v558
    %v572 = vpop.f32.mrf.mxu0
    %v573 = vadd.f32 0.0, %v572
    %v574 = vpop.f32.mrf.mxu0
    %575 = vdwg.mxu0
    %v576 = vmul.f32 %v550, 0.35355338
    %v577 = vmul.f32 %v573, 0.35355338
    %v578 = vadd.f32 %v576, %v225
    %v579 = vadd.f32 %v577, %v226
    %v580 = vsel %vm179, %v578, -inf
    %581 = vmax.xlane.f32.xlu0 %v580
    %v582 = vpop.xlane.xlu0 %581
    %v583 = vsel %vm179, %v579, -inf
    %584 = vmax.xlane.f32.xlu0 %v583
    %v585 = vpop.xlane.xlu0 %584
    %v586 = vsub.f32 %v578, %v582
    %v587 = vsub.f32 %v579, %v585
    %v588 = vmul.f32 %v586, 1.442695
    %v589 = vpow.pop %v588
    %v590 = vmul.f32 %v587, 1.442695
    %v591 = vpow.pop %v590
    %v592 = vsel %vm179, %v589, 0.0
    %593 = vadd.xlane.f32.xlu0 %v592
    %v594 = vpop.xlane.xlu0 %593
    %v595 = vsel %vm179, %v591, 0.0
    %596 = vadd.xlane.f32.xlu0 %v595
    %v597 = vpop.xlane.xlu0 %596
    %v598 = vrcp.pop %v594
    %v599 = vrcp.pop %v597
    %v600 = vmul.f32 %v589, %v598
    %v601 = vmul.f32 %v591, %v599
    %v602 = vpack.c.bf16 %v600, %v600
    %v603 = vpack.c.bf16 %v601, %v601
    %604 = vrot.lane.b32.xlu0 %v176, 40
    %v605 = vpop.permute.xlu0 %604
    %v607 = vsel %vm179, %v602, 0
    %v610 = vsel %vm260, %v605, 0
    %612 = vmatpush.bf16.msra.mxu0 0
    %613 = vmatpush.bf16.msra.mxu0 0
    %614 = vmatpush.bf16.msra.mxu0 0
    %615 = vmatpush.bf16.msra.mxu0 0
    %616 = vmatpush.bf16.msra.mxu0 0
    %617 = vmatpush.bf16.msra.mxu0 0
    %618 = vmatpush.bf16.msra.mxu0 0
    %619 = vmatpush.bf16.msra.mxu0 %v610
    %620 = vmatmul.bf16.gmra.mxu0 %v607
    %v621 = vpop.f32.mrf.mxu0
    %v622 = vadd.f32 0.0, %v621
    %v623 = vpop.f32.mrf.mxu0
    %624 = vdwg.mxu0
    %625 = vrot.lane.b32.xlu0 %v201, 40
    %v626 = vpop.permute.xlu0 %625
    %v628 = vsel %vm179, %v603, 0
    %v631 = vsel %vm260, %v626, 0
    %633 = vmatpush.bf16.msra.mxu0 0
    %634 = vmatpush.bf16.msra.mxu0 0
    %635 = vmatpush.bf16.msra.mxu0 0
    %636 = vmatpush.bf16.msra.mxu0 0
    %637 = vmatpush.bf16.msra.mxu0 0
    %638 = vmatpush.bf16.msra.mxu0 0
    %639 = vmatpush.bf16.msra.mxu0 0
    %640 = vmatpush.bf16.msra.mxu0 %v631
    %641 = vmatmul.bf16.gmra.mxu0 %v628
    %v642 = vpop.f32.mrf.mxu0
    %v643 = vadd.f32 0.0, %v642
    %v644 = vpop.f32.mrf.mxu0
    %645 = vdwg.mxu0
    %648 = vrot.lane.b32.xlu0 %v390, 8
    %v649 = vpop.permute.xlu0 %648
    %650 = vrot.lane.b32.xlu0 %v411, 8
    %v651 = vpop.permute.xlu0 %650
    %656 = vrot.lane.b32.xlu0 %v506, 16
    %v657 = vpop.permute.xlu0 %656
    %658 = vrot.lane.b32.xlu0 %v527, 16
    %v659 = vpop.permute.xlu0 %658
    %664 = vrot.lane.b32.xlu0 %v622, 24
    %v665 = vpop.permute.xlu0 %664
    %666 = vrot.lane.b32.xlu0 %v643, 24
    %v667 = vpop.permute.xlu0 %666
    %v670 = vsel %vm179, %v274, %v649
    %v671 = vsel %vm179, %v295, %v651
    %vm672 = vcmask 130048
    %v673 = vsel %vm672, %v670, %v657
    %v674 = vsel %vm672, %v671, %v659
    %vm675 = vcmask 195584
    %v676 = vsel %vm675, %v673, %v665
    %v677 = vsel %vm675, %v674, %v667
    %v678 = vld [vmem:[%s7] sm:$0xff]
    %v679 = vld [vmem:[%s7 + $0x8] sm:$0xff]
    %v680 = vld [vmem:[%s7 + $0x10] sm:$0xff]
    %v681 = vld [vmem:[%s7 + $0x18] sm:$0xff]
    %v682 = vpack.c.bf16 %v677, %v676
    %v683 = vpack.c.bf16 %v679, %v678
    %v684 = vpack.c.bf16 %v681, %v680
    %v685 = vld [vmem:[%s8] sm:$0x1]
    %v687 = vperm.slane %v685, 0
    %v690 = vsel %vm77, %v682, 0
    %692 = vmatpush.bf16.msra.mxu0 0
    %693 = vmatpush.bf16.msra.mxu0 0
    %694 = vmatpush.bf16.msra.mxu0 0
    %695 = vmatpush.bf16.msra.mxu0 0
    %696 = vmatpush.bf16.msra.mxu0 0
    %697 = vmatpush.bf16.msra.mxu0 0
    %698 = vmatpush.bf16.msra.mxu0 %v684
    %699 = vmatpush.bf16.msra.mxu0 %v683
    %700 = vmatmul.bf16.gmra.mxu0 %v690
    %v701 = vpop.f32.mrf.mxu0
    %v702 = vadd.f32 %v687, %v701
    %v703 = vpop.f32.mrf.mxu0
    %v704 = vadd.f32 %v687, %v703
    %705 = vdwg.mxu0
    %v706 = vadd.f32 %v137, %v702
    %v707 = vadd.f32 %v138, %v704
    %v708 = vld [vmem:[%s9] sm:$0x1]
    %v709 = vld [vmem:[%s10] sm:$0x1]
    %v710 = vsel %vm77, %v706, 0.0
    %711 = vadd.xlane.f32.xlu0 %v710
    %v712 = vpop.xlane.xlu0 %711
    %v713 = vsel %vm77, %v707, 0.0
    %714 = vadd.xlane.f32.xlu0 %v713
    %v715 = vpop.xlane.xlu0 %714
    %v716 = vmul.f32 %v712, %v90
    %v717 = vmul.f32 %v715, %v90
    %v718 = vsub.f32 %v706, %v716
    %v719 = vsub.f32 %v707, %v717
    %v720 = vmul.f32 %v718, %v718
    %v721 = vmul.f32 %v719, %v719
    %v722 = vsel %vm77, %v720, 0.0
    %723 = vadd.xlane.f32.xlu0 %v722
    %v724 = vpop.xlane.xlu0 %723
    %v725 = vsel %vm77, %v721, 0.0
    %726 = vadd.xlane.f32.xlu0 %v725
    %v727 = vpop.xlane.xlu0 %726
    %v728 = vmul.f32 %v724, %v90
    %v729 = vmul.f32 %v727, %v90
    %v730 = vadd.f32 %v728, 1e-12
    %v731 = vadd.f32 %v729, 1e-12
    %v732 = vrsqrt.pop %v730
    %v733 = vmul.f32 %v732, %v730
    %v734 = vmul.f32 %v733, %v732
    %v735 = vmul.f32 0.5, %v734
    %v736 = vsub.f32 1.5, %v735
    %v737 = vmul.f32 %v732, %v736
    %vm738 = vweird.f32 %v730
    %vm739 = vweird.f32 %v732
    %vm740 = vmor %vm738, %vm739
    %v741 = vsel %vm740, %v732, %v737
    %v742 = vrsqrt.pop %v731
    %v743 = vmul.f32 %v742, %v731
    %v744 = vmul.f32 %v743, %v742
    %v745 = vmul.f32 0.5, %v744
    %v746 = vsub.f32 1.5, %v745
    %v747 = vmul.f32 %v742, %v746
    %vm748 = vweird.f32 %v731
    %vm749 = vweird.f32 %v742
    %vm750 = vmor %vm748, %vm749
    %v751 = vsel %vm750, %v742, %v747
    %v752 = vmul.f32 %v718, %v741
    %v753 = vmul.f32 %v719, %v751
    %v755 = vperm.slane %v708, 0
    %v757 = vmul.f32 %v752, %v755
    %v758 = vmul.f32 %v753, %v755
    %v760 = vperm.slane %v709, 0
    %v762 = vadd.f32 %v757, %v760
    %v763 = vadd.f32 %v758, %v760
    %v764 = vld [vmem:[%s11] sm:$0xff]
    %v765 = vld [vmem:[%s11 + $0x8] sm:$0xff]
    %v766 = vld [vmem:[%s11 + $0x10] sm:$0xff]
    %v767 = vld [vmem:[%s11 + $0x18] sm:$0xff]
    %v768 = vpack.c.bf16 %v763, %v762
    %v769 = vpack.c.bf16 %v765, %v764
    %v770 = vpack.c.bf16 %v767, %v766
    %v771 = vld [vmem:[%s12] sm:$0x1]
    %v773 = vperm.slane %v771, 0
    %v776 = vsel %vm77, %v768, 0
    %778 = vmatpush.bf16.msra.mxu0 0
    %779 = vmatpush.bf16.msra.mxu0 0
    %780 = vmatpush.bf16.msra.mxu0 0
    %781 = vmatpush.bf16.msra.mxu0 0
    %782 = vmatpush.bf16.msra.mxu0 0
    %783 = vmatpush.bf16.msra.mxu0 0
    %784 = vmatpush.bf16.msra.mxu0 %v770
    %785 = vmatpush.bf16.msra.mxu0 %v769
    %786 = vmatmul.bf16.gmra.mxu0 %v776
    %v787 = vpop.f32.mrf.mxu0
    %v788 = vadd.f32 %v773, %v787
    %v789 = vpop.f32.mrf.mxu0
    %v790 = vadd.f32 %v773, %v789
    %791 = vdwg.mxu0
    %v792 = vmul.f32 %v788, 0.5
    %v793 = vmul.f32 %v790, 0.5
    %v794 = vmul.f32 %v788, 0.70710677
    %v795 = vmul.f32 %v790, 0.70710677
    %vm796 = vcmp.ge.f32.partialorder %v794, 0.0
    %vm797 = vcmp.ge.f32.partialorder %v795, 0.0
    %v798 = vsel %vm796, 1.0, -1.0
    %v799 = vsel %vm797, 1.0, -1.0
    %v800 = vand.u32 2147483647, %v794
    %v801 = vand.u32 2147483647, %v795
    %v802 = vmul.f32 %v800, 0.3275911
    %v803 = vmul.f32 %v801, 0.3275911
    %v804 = vadd.f32 %v802, 1.0
    %v805 = vadd.f32 %v803, 1.0
    %v806 = vrcp.pop %v804
    %v807 = vmul.f32 %v804, %v806
    %v808 = vsub.f32 1.0, %v807
    %v809 = vmul.f32 %v806, %v808
    %v810 = vadd.f32 %v806, %v809
    %vm811 = vweird.f32 %v804
    %vm812 = vweird.f32 %v806
    %vm813 = vmor %vm811, %vm812
    %v814 = vsel %vm813, %v806, %v810
    %v815 = vand.u32 2147483647, %v804
    %vm816 = vcmp.eq.f32.partialorder %v815, 8.507059e+37
    %v817 = vand.u32 %v804, 2147483648
    %v818 = vor.u32 1.1754944e-38, %v817
    %v819 = vsel %vm816, %v818, %v814
    %v820 = vmul.f32 1.0, %v819
    %v821 = vrcp.pop %v805
    %v822 = vmul.f32 %v805, %v821
    %v823 = vsub.f32 1.0, %v822
    %v824 = vmul.f32 %v821, %v823
    %v825 = vadd.f32 %v821, %v824
    %vm826 = vweird.f32 %v805
    %vm827 = vweird.f32 %v821
    %vm828 = vmor %vm826, %vm827
    %v829 = vsel %vm828, %v821, %v825
    %v830 = vand.u32 2147483647, %v805
    %vm831 = vcmp.eq.f32.partialorder %v830, 8.507059e+37
    %v832 = vand.u32 %v805, 2147483648
    %v833 = vor.u32 1.1754944e-38, %v832
    %v834 = vsel %vm831, %v833, %v829
    %v835 = vmul.f32 1.0, %v834
    %v836 = vmul.f32 %v820, 1.0614054
    %v837 = vmul.f32 %v835, 1.0614054
    %v838 = vadd.f32 %v836, -1.4531521
    %v839 = vadd.f32 %v837, -1.4531521
    %v840 = vmul.f32 %v838, %v820
    %v841 = vmul.f32 %v839, %v835
    %v842 = vadd.f32 %v840, 1.4214138
    %v843 = vadd.f32 %v841, 1.4214138
    %v844 = vmul.f32 %v842, %v820
    %v845 = vmul.f32 %v843, %v835
    %v846 = vadd.f32 %v844, -0.28449672
    %v847 = vadd.f32 %v845, -0.28449672
    %v848 = vmul.f32 %v846, %v820
    %v849 = vmul.f32 %v847, %v835
    %v850 = vadd.f32 %v848, 0.2548296
    %v851 = vadd.f32 %v849, 0.2548296
    %v852 = vmul.f32 %v850, %v820
    %v853 = vmul.f32 %v851, %v835
    %v854 = vsub.f32 0.0, %v800
    %v855 = vsub.f32 0.0, %v801
    %v856 = vmul.f32 %v854, %v800
    %v857 = vmul.f32 %v855, %v801
    %v858 = vmul.f32 %v856, 1.442695
    %v859 = vpow.pop %v858
    %v860 = vmul.f32 %v857, 1.442695
    %v861 = vpow.pop %v860
    %v862 = vmul.f32 %v852, %v859
    %v863 = vmul.f32 %v853, %v861
    %v864 = vsub.f32 1.0, %v862
    %v865 = vsub.f32 1.0, %v863
    %v866 = vmul.f32 %v798, %v864
    %v867 = vmul.f32 %v799, %v865
    %v868 = vadd.f32 %v866, 1.0
    %v869 = vadd.f32 %v867, 1.0
    %v870 = vmul.f32 %v792, %v868
    %v871 = vmul.f32 %v793, %v869
    %v872 = vld [vmem:[%s13] sm:$0xff]
    %v873 = vld [vmem:[%s13 + $0x8] sm:$0xff]
    %v874 = vld [vmem:[%s13 + $0x10] sm:$0xff]
    %v875 = vld [vmem:[%s13 + $0x18] sm:$0xff]
    %v876 = vld [vmem:[%s13 + $0x20] sm:$0xff]
    %v877 = vld [vmem:[%s13 + $0x28] sm:$0xff]
    %v878 = vld [vmem:[%s13 + $0x30] sm:$0xff]
    %v879 = vld [vmem:[%s13 + $0x38] sm:$0xff]
    %v880 = vpack.c.bf16 %v871, %v870
    %v881 = vpack.c.bf16 %v873, %v872
    %v882 = vpack.c.bf16 %v875, %v874
    %v883 = vpack.c.bf16 %v877, %v876
    %v884 = vpack.c.bf16 %v879, %v878
    %v885 = vld [vmem:[%s14] sm:$0x1]
    %v887 = vperm.slane %v885, 0
    %vm889 = vcmask 523264
    %v891 = vsel %vm889, %v880, 0
    %893 = vmatpush.bf16.msra.mxu0 0
    %894 = vmatpush.bf16.msra.mxu0 0
    %895 = vmatpush.bf16.msra.mxu0 0
    %896 = vmatpush.bf16.msra.mxu0 0
    %897 = vmatpush.bf16.msra.mxu0 %v884
    %898 = vmatpush.bf16.msra.mxu0 %v883
    %899 = vmatpush.bf16.msra.mxu0 %v882
    %900 = vmatpush.bf16.msra.mxu0 %v881
    %901 = vmatmul.bf16.gmra.mxu0 %v891
    %v902 = vpop.f32.mrf.mxu0
    %v903 = vadd.f32 %v887, %v902
    %v904 = vpop.f32.mrf.mxu0
    %v905 = vadd.f32 %v887, %v904
    %906 = vdwg.mxu0
    %v907 = vadd.f32 %v762, %v903
    %v908 = vadd.f32 %v763, %v905
    %v909 = vld [vmem:[%s15] sm:$0x1]
    %v910 = vld [vmem:[%s16] sm:$0x1]
    %v911 = vsel %vm77, %v907, 0.0
    %912 = vadd.xlane.f32.xlu0 %v911
    %v913 = vpop.xlane.xlu0 %912
    %v914 = vsel %vm77, %v908, 0.0
    %915 = vadd.xlane.f32.xlu0 %v914
    %v916 = vpop.xlane.xlu0 %915
    %v917 = vmul.f32 %v913, %v90
    %v918 = vmul.f32 %v916, %v90
    %v919 = vsub.f32 %v907, %v917
    %v920 = vsub.f32 %v908, %v918
    %v921 = vmul.f32 %v919, %v919
    %v922 = vmul.f32 %v920, %v920
    %v923 = vsel %vm77, %v921, 0.0
    %924 = vadd.xlane.f32.xlu0 %v923
    %v925 = vpop.xlane.xlu0 %924
    %v926 = vsel %vm77, %v922, 0.0
    %927 = vadd.xlane.f32.xlu0 %v926
    %v928 = vpop.xlane.xlu0 %927
    %v929 = vmul.f32 %v925, %v90
    %v930 = vmul.f32 %v928, %v90
    %v931 = vadd.f32 %v929, 1e-12
    %v932 = vadd.f32 %v930, 1e-12
    %v933 = vrsqrt.pop %v931
    %v934 = vmul.f32 %v933, %v931
    %v935 = vmul.f32 %v934, %v933
    %v936 = vmul.f32 0.5, %v935
    %v937 = vsub.f32 1.5, %v936
    %v938 = vmul.f32 %v933, %v937
    %vm939 = vweird.f32 %v931
    %vm940 = vweird.f32 %v933
    %vm941 = vmor %vm939, %vm940
    %v942 = vsel %vm941, %v933, %v938
    %v943 = vrsqrt.pop %v932
    %v944 = vmul.f32 %v943, %v932
    %v945 = vmul.f32 %v944, %v943
    %v946 = vmul.f32 0.5, %v945
    %v947 = vsub.f32 1.5, %v946
    %v948 = vmul.f32 %v943, %v947
    %vm949 = vweird.f32 %v932
    %vm950 = vweird.f32 %v943
    %vm951 = vmor %vm949, %vm950
    %v952 = vsel %vm951, %v943, %v948
    %v953 = vmul.f32 %v919, %v942
    %v954 = vmul.f32 %v920, %v952
    %v956 = vperm.slane %v909, 0
    %v958 = vmul.f32 %v953, %v956
    %v959 = vmul.f32 %v954, %v956
    %v961 = vperm.slane %v910, 0
    %v963 = vadd.f32 %v958, %v961
    %v964 = vadd.f32 %v959, %v961
    %s965 = scalar_lea.vmem %s5, 32
    %v966 = vld [vmem:[%s965] sm:$0xff]
    %v967 = vld [vmem:[%s965 + $0x8] sm:$0xff]
    %v968 = vld [vmem:[%s965 + $0x10] sm:$0xff]
    %v969 = vld [vmem:[%s965 + $0x18] sm:$0xff]
    %v970 = vpack.c.bf16 %v964, %v963
    %v971 = vpack.c.bf16 %v967, %v966
    %v972 = vpack.c.bf16 %v969, %v968
    %s973 = scalar_lea.vmem %s6, 1
    %v974 = vld [vmem:[%s973] sm:$0x1]
    %v976 = vperm.slane %v974, 0
    %v979 = vsel %vm77, %v970, 0
    %981 = vmatpush.bf16.msra.mxu0 0
    %982 = vmatpush.bf16.msra.mxu0 0
    %983 = vmatpush.bf16.msra.mxu0 0
    %984 = vmatpush.bf16.msra.mxu0 0
    %985 = vmatpush.bf16.msra.mxu0 0
    %986 = vmatpush.bf16.msra.mxu0 0
    %987 = vmatpush.bf16.msra.mxu0 %v972
    %988 = vmatpush.bf16.msra.mxu0 %v971
    %989 = vmatmul.bf16.gmra.mxu0 %v979
    %v990 = vpop.f32.mrf.mxu0
    %v991 = vadd.f32 %v976, %v990
    %v992 = vpop.f32.mrf.mxu0
    %v993 = vadd.f32 %v976, %v992
    %994 = vdwg.mxu0
    %v995 = vpack.c.bf16 %v991, %v991
    %v996 = vpack.c.bf16 %v993, %v993
    %v998 = vunpack.c.l.b16 %v995
    %v999 = vpack.c.b16 %v998, %v998
    %1000 = vrot.lane.b32.xlu0 %v999, 96
    %v1001 = vpop.permute.xlu0 %1000
    %v1003 = vsel %vm179, %v995, 0
    %v1006 = vsel %vm179, %v1001, 0
    %1008 = vmatpush.bf16.xpose.msra.mxu0 0
    %1009 = vmatpush.bf16.xpose.msra.mxu0 0
    %1010 = vmatpush.bf16.xpose.msra.mxu0 0
    %1011 = vmatpush.bf16.xpose.msra.mxu0 0
    %1012 = vmatpush.bf16.xpose.msra.mxu0 0
    %1013 = vmatpush.bf16.xpose.msra.mxu0 0
    %1014 = vmatpush.bf16.xpose.msra.mxu0 0
    %1015 = vmatpush.bf16.xpose.msra.mxu0 %v1006
    %1016 = vmatmul.bf16.gmra.mxu0 %v1003
    %v1017 = vpop.f32.mrf.mxu0
    %v1018 = vadd.f32 0.0, %v1017
    %v1019 = vpop.f32.mrf.mxu0
    %1020 = vdwg.mxu0
    %v1022 = vunpack.c.l.b16 %v996
    %v1023 = vpack.c.b16 %v1022, %v1022
    %1024 = vrot.lane.b32.xlu0 %v1023, 96
    %v1025 = vpop.permute.xlu0 %1024
    %v1027 = vsel %vm179, %v996, 0
    %v1030 = vsel %vm179, %v1025, 0
    %1032 = vmatpush.bf16.xpose.msra.mxu0 0
    %1033 = vmatpush.bf16.xpose.msra.mxu0 0
    %1034 = vmatpush.bf16.xpose.msra.mxu0 0
    %1035 = vmatpush.bf16.xpose.msra.mxu0 0
    %1036 = vmatpush.bf16.xpose.msra.mxu0 0
    %1037 = vmatpush.bf16.xpose.msra.mxu0 0
    %1038 = vmatpush.bf16.xpose.msra.mxu0 0
    %1039 = vmatpush.bf16.xpose.msra.mxu0 %v1030
    %1040 = vmatmul.bf16.gmra.mxu0 %v1027
    %v1041 = vpop.f32.mrf.mxu0
    %v1042 = vadd.f32 0.0, %v1041
    %v1043 = vpop.f32.mrf.mxu0
    %1044 = vdwg.mxu0
    %v1045 = vmul.f32 %v1018, 0.35355338
    %v1046 = vmul.f32 %v1042, 0.35355338
    %v1047 = vadd.f32 %v1045, %v225
    %v1048 = vadd.f32 %v1046, %v226
    %v1049 = vsel %vm179, %v1047, -inf
    %1050 = vmax.xlane.f32.xlu0 %v1049
    %v1051 = vpop.xlane.xlu0 %1050
    %v1052 = vsel %vm179, %v1048, -inf
    %1053 = vmax.xlane.f32.xlu0 %v1052
    %v1054 = vpop.xlane.xlu0 %1053
    %v1055 = vsub.f32 %v1047, %v1051
    %v1056 = vsub.f32 %v1048, %v1054
    %v1057 = vmul.f32 %v1055, 1.442695
    %v1058 = vpow.pop %v1057
    %v1059 = vmul.f32 %v1056, 1.442695
    %v1060 = vpow.pop %v1059
    %v1061 = vsel %vm179, %v1058, 0.0
    %1062 = vadd.xlane.f32.xlu0 %v1061
    %v1063 = vpop.xlane.xlu0 %1062
    %v1064 = vsel %vm179, %v1060, 0.0
    %1065 = vadd.xlane.f32.xlu0 %v1064
    %v1066 = vpop.xlane.xlu0 %1065
    %v1067 = vrcp.pop %v1063
    %v1068 = vrcp.pop %v1066
    %v1069 = vmul.f32 %v1058, %v1067
    %v1070 = vmul.f32 %v1060, %v1068
    %v1071 = vpack.c.bf16 %v1069, %v1069
    %v1072 = vpack.c.bf16 %v1070, %v1070
    %1073 = vrot.lane.b32.xlu0 %v999, 64
    %v1074 = vpop.permute.xlu0 %1073
    %v1076 = vsel %vm179, %v1071, 0
    %v1079 = vsel %vm260, %v1074, 0
    %1081 = vmatpush.bf16.msra.mxu0 0
    %1082 = vmatpush.bf16.msra.mxu0 0
    %1083 = vmatpush.bf16.msra.mxu0 0
    %1084 = vmatpush.bf16.msra.mxu0 0
    %1085 = vmatpush.bf16.msra.mxu0 0
    %1086 = vmatpush.bf16.msra.mxu0 0
    %1087 = vmatpush.bf16.msra.mxu0 0
    %1088 = vmatpush.bf16.msra.mxu0 %v1079
    %1089 = vmatmul.bf16.gmra.mxu0 %v1076
    %v1090 = vpop.f32.mrf.mxu0
    %v1091 = vadd.f32 0.0, %v1090
    %v1092 = vpop.f32.mrf.mxu0
    %1093 = vdwg.mxu0
    %1094 = vrot.lane.b32.xlu0 %v1023, 64
    %v1095 = vpop.permute.xlu0 %1094
    %v1097 = vsel %vm179, %v1072, 0
    %v1100 = vsel %vm260, %v1095, 0
    %1102 = vmatpush.bf16.msra.mxu0 0
    %1103 = vmatpush.bf16.msra.mxu0 0
    %1104 = vmatpush.bf16.msra.mxu0 0
    %1105 = vmatpush.bf16.msra.mxu0 0
    %1106 = vmatpush.bf16.msra.mxu0 0
    %1107 = vmatpush.bf16.msra.mxu0 0
    %1108 = vmatpush.bf16.msra.mxu0 0
    %1109 = vmatpush.bf16.msra.mxu0 %v1100
    %1110 = vmatmul.bf16.gmra.mxu0 %v1097
    %v1111 = vpop.f32.mrf.mxu0
    %v1112 = vadd.f32 0.0, %v1111
    %v1113 = vpop.f32.mrf.mxu0
    %1114 = vdwg.mxu0
    %1115 = vrot.lane.b32.xlu0 %v999, 120
    %v1116 = vpop.permute.xlu0 %1115
    %1117 = vrot.lane.b32.xlu0 %v999, 88
    %v1118 = vpop.permute.xlu0 %1117
    %v1120 = vsel %vm179, %v1116, 0
    %v1123 = vsel %vm179, %v1118, 0
    %1125 = vmatpush.bf16.xpose.msra.mxu0 0
    %1126 = vmatpush.bf16.xpose.msra.mxu0 0
    %1127 = vmatpush.bf16.xpose.msra.mxu0 0
    %1128 = vmatpush.bf16.xpose.msra.mxu0 0
    %1129 = vmatpush.bf16.xpose.msra.mxu0 0
    %1130 = vmatpush.bf16.xpose.msra.mxu0 0
    %1131 = vmatpush.bf16.xpose.msra.mxu0 0
    %1132 = vmatpush.bf16.xpose.msra.mxu0 %v1123
    %1133 = vmatmul.bf16.gmra.mxu0 %v1120
    %v1134 = vpop.f32.mrf.mxu0
    %v1135 = vadd.f32 0.0, %v1134
    %v1136 = vpop.f32.mrf.mxu0
    %1137 = vdwg.mxu0
    %1138 = vrot.lane.b32.xlu0 %v1023, 120
    %v1139 = vpop.permute.xlu0 %1138
    %1140 = vrot.lane.b32.xlu0 %v1023, 88
    %v1141 = vpop.permute.xlu0 %1140
    %v1143 = vsel %vm179, %v1139, 0
    %v1146 = vsel %vm179, %v1141, 0
    %1148 = vmatpush.bf16.xpose.msra.mxu0 0
    %1149 = vmatpush.bf16.xpose.msra.mxu0 0
    %1150 = vmatpush.bf16.xpose.msra.mxu0 0
    %1151 = vmatpush.bf16.xpose.msra.mxu0 0
    %1152 = vmatpush.bf16.xpose.msra.mxu0 0
    %1153 = vmatpush.bf16.xpose.msra.mxu0 0
    %1154 = vmatpush.bf16.xpose.msra.mxu0 0
    %1155 = vmatpush.bf16.xpose.msra.mxu0 %v1146
    %1156 = vmatmul.bf16.gmra.mxu0 %v1143
    %v1157 = vpop.f32.mrf.mxu0
    %v1158 = vadd.f32 0.0, %v1157
    %v1159 = vpop.f32.mrf.mxu0
    %1160 = vdwg.mxu0
    %v1161 = vmul.f32 %v1135, 0.35355338
    %v1162 = vmul.f32 %v1158, 0.35355338
    %v1163 = vadd.f32 %v1161, %v225
    %v1164 = vadd.f32 %v1162, %v226
    %v1165 = vsel %vm179, %v1163, -inf
    %1166 = vmax.xlane.f32.xlu0 %v1165
    %v1167 = vpop.xlane.xlu0 %1166
    %v1168 = vsel %vm179, %v1164, -inf
    %1169 = vmax.xlane.f32.xlu0 %v1168
    %v1170 = vpop.xlane.xlu0 %1169
    %v1171 = vsub.f32 %v1163, %v1167
    %v1172 = vsub.f32 %v1164, %v1170
    %v1173 = vmul.f32 %v1171, 1.442695
    %v1174 = vpow.pop %v1173
    %v1175 = vmul.f32 %v1172, 1.442695
    %v1176 = vpow.pop %v1175
    %v1177 = vsel %vm179, %v1174, 0.0
    %1178 = vadd.xlane.f32.xlu0 %v1177
    %v1179 = vpop.xlane.xlu0 %1178
    %v1180 = vsel %vm179, %v1176, 0.0
    %1181 = vadd.xlane.f32.xlu0 %v1180
    %v1182 = vpop.xlane.xlu0 %1181
    %v1183 = vrcp.pop %v1179
    %v1184 = vrcp.pop %v1182
    %v1185 = vmul.f32 %v1174, %v1183
    %v1186 = vmul.f32 %v1176, %v1184
    %v1187 = vpack.c.bf16 %v1185, %v1185
    %v1188 = vpack.c.bf16 %v1186, %v1186
    %1189 = vrot.lane.b32.xlu0 %v999, 56
    %v1190 = vpop.permute.xlu0 %1189
    %v1192 = vsel %vm179, %v1187, 0
    %v1195 = vsel %vm260, %v1190, 0
    %1197 = vmatpush.bf16.msra.mxu0 0
    %1198 = vmatpush.bf16.msra.mxu0 0
    %1199 = vmatpush.bf16.msra.mxu0 0
    %1200 = vmatpush.bf16.msra.mxu0 0
    %1201 = vmatpush.bf16.msra.mxu0 0
    %1202 = vmatpush.bf16.msra.mxu0 0
    %1203 = vmatpush.bf16.msra.mxu0 0
    %1204 = vmatpush.bf16.msra.mxu0 %v1195
    %1205 = vmatmul.bf16.gmra.mxu0 %v1192
    %v1206 = vpop.f32.mrf.mxu0
    %v1207 = vadd.f32 0.0, %v1206
    %v1208 = vpop.f32.mrf.mxu0
    %1209 = vdwg.mxu0
    %1210 = vrot.lane.b32.xlu0 %v1023, 56
    %v1211 = vpop.permute.xlu0 %1210
    %v1213 = vsel %vm179, %v1188, 0
    %v1216 = vsel %vm260, %v1211, 0
    %1218 = vmatpush.bf16.msra.mxu0 0
    %1219 = vmatpush.bf16.msra.mxu0 0
    %1220 = vmatpush.bf16.msra.mxu0 0
    %1221 = vmatpush.bf16.msra.mxu0 0
    %1222 = vmatpush.bf16.msra.mxu0 0
    %1223 = vmatpush.bf16.msra.mxu0 0
    %1224 = vmatpush.bf16.msra.mxu0 0
    %1225 = vmatpush.bf16.msra.mxu0 %v1216
    %1226 = vmatmul.bf16.gmra.mxu0 %v1213
    %v1227 = vpop.f32.mrf.mxu0
    %v1228 = vadd.f32 0.0, %v1227
    %v1229 = vpop.f32.mrf.mxu0
    %1230 = vdwg.mxu0
    %1231 = vrot.lane.b32.xlu0 %v999, 112
    %v1232 = vpop.permute.xlu0 %1231
    %1233 = vrot.lane.b32.xlu0 %v999, 80
    %v1234 = vpop.permute.xlu0 %1233
    %v1236 = vsel %vm179, %v1232, 0
    %v1239 = vsel %vm179, %v1234, 0
    %1241 = vmatpush.bf16.xpose.msra.mxu0 0
    %1242 = vmatpush.bf16.xpose.msra.mxu0 0
    %1243 = vmatpush.bf16.xpose.msra.mxu0 0
    %1244 = vmatpush.bf16.xpose.msra.mxu0 0
    %1245 = vmatpush.bf16.xpose.msra.mxu0 0
    %1246 = vmatpush.bf16.xpose.msra.mxu0 0
    %1247 = vmatpush.bf16.xpose.msra.mxu0 0
    %1248 = vmatpush.bf16.xpose.msra.mxu0 %v1239
    %1249 = vmatmul.bf16.gmra.mxu0 %v1236
    %v1250 = vpop.f32.mrf.mxu0
    %v1251 = vadd.f32 0.0, %v1250
    %v1252 = vpop.f32.mrf.mxu0
    %1253 = vdwg.mxu0
    %1254 = vrot.lane.b32.xlu0 %v1023, 112
    %v1255 = vpop.permute.xlu0 %1254
    %1256 = vrot.lane.b32.xlu0 %v1023, 80
    %v1257 = vpop.permute.xlu0 %1256
    %v1259 = vsel %vm179, %v1255, 0
    %v1262 = vsel %vm179, %v1257, 0
    %1264 = vmatpush.bf16.xpose.msra.mxu0 0
    %1265 = vmatpush.bf16.xpose.msra.mxu0 0
    %1266 = vmatpush.bf16.xpose.msra.mxu0 0
    %1267 = vmatpush.bf16.xpose.msra.mxu0 0
    %1268 = vmatpush.bf16.xpose.msra.mxu0 0
    %1269 = vmatpush.bf16.xpose.msra.mxu0 0
    %1270 = vmatpush.bf16.xpose.msra.mxu0 0
    %1271 = vmatpush.bf16.xpose.msra.mxu0 %v1262
    %1272 = vmatmul.bf16.gmra.mxu0 %v1259
    %v1273 = vpop.f32.mrf.mxu0
    %v1274 = vadd.f32 0.0, %v1273
    %v1275 = vpop.f32.mrf.mxu0
    %1276 = vdwg.mxu0
    %v1277 = vmul.f32 %v1251, 0.35355338
    %v1278 = vmul.f32 %v1274, 0.35355338
    %v1279 = vadd.f32 %v1277, %v225
    %v1280 = vadd.f32 %v1278, %v226
    %v1281 = vsel %vm179, %v1279, -inf
    %1282 = vmax.xlane.f32.xlu0 %v1281
    %v1283 = vpop.xlane.xlu0 %1282
    %v1284 = vsel %vm179, %v1280, -inf
    %1285 = vmax.xlane.f32.xlu0 %v1284
    %v1286 = vpop.xlane.xlu0 %1285
    %v1287 = vsub.f32 %v1279, %v1283
    %v1288 = vsub.f32 %v1280, %v1286
    %v1289 = vmul.f32 %v1287, 1.442695
    %v1290 = vpow.pop %v1289
    %v1291 = vmul.f32 %v1288, 1.442695
    %v1292 = vpow.pop %v1291
    %v1293 = vsel %vm179, %v1290, 0.0
    %1294 = vadd.xlane.f32.xlu0 %v1293
    %v1295 = vpop.xlane.xlu0 %1294
    %v1296 = vsel %vm179, %v1292, 0.0
    %1297 = vadd.xlane.f32.xlu0 %v1296
    %v1298 = vpop.xlane.xlu0 %1297
    %v1299 = vrcp.pop %v1295
    %v1300 = vrcp.pop %v1298
    %v1301 = vmul.f32 %v1290, %v1299
    %v1302 = vmul.f32 %v1292, %v1300
    %v1303 = vpack.c.bf16 %v1301, %v1301
    %v1304 = vpack.c.bf16 %v1302, %v1302
    %1305 = vrot.lane.b32.xlu0 %v999, 48
    %v1306 = vpop.permute.xlu0 %1305
    %v1308 = vsel %vm179, %v1303, 0
    %v1311 = vsel %vm260, %v1306, 0
    %1313 = vmatpush.bf16.msra.mxu0 0
    %1314 = vmatpush.bf16.msra.mxu0 0
    %1315 = vmatpush.bf16.msra.mxu0 0
    %1316 = vmatpush.bf16.msra.mxu0 0
    %1317 = vmatpush.bf16.msra.mxu0 0
    %1318 = vmatpush.bf16.msra.mxu0 0
    %1319 = vmatpush.bf16.msra.mxu0 0
    %1320 = vmatpush.bf16.msra.mxu0 %v1311
    %1321 = vmatmul.bf16.gmra.mxu0 %v1308
    %v1322 = vpop.f32.mrf.mxu0
    %v1323 = vadd.f32 0.0, %v1322
    %v1324 = vpop.f32.mrf.mxu0
    %1325 = vdwg.mxu0
    %1326 = vrot.lane.b32.xlu0 %v1023, 48
    %v1327 = vpop.permute.xlu0 %1326
    %v1329 = vsel %vm179, %v1304, 0
    %v1332 = vsel %vm260, %v1327, 0
    %1334 = vmatpush.bf16.msra.mxu0 0
    %1335 = vmatpush.bf16.msra.mxu0 0
    %1336 = vmatpush.bf16.msra.mxu0 0
    %1337 = vmatpush.bf16.msra.mxu0 0
    %1338 = vmatpush.bf16.msra.mxu0 0
    %1339 = vmatpush.bf16.msra.mxu0 0
    %1340 = vmatpush.bf16.msra.mxu0 0
    %1341 = vmatpush.bf16.msra.mxu0 %v1332
    %1342 = vmatmul.bf16.gmra.mxu0 %v1329
    %v1343 = vpop.f32.mrf.mxu0
    %v1344 = vadd.f32 0.0, %v1343
    %v1345 = vpop.f32.mrf.mxu0
    %1346 = vdwg.mxu0
    %1347 = vrot.lane.b32.xlu0 %v999, 104
    %v1348 = vpop.permute.xlu0 %1347
    %1349 = vrot.lane.b32.xlu0 %v999, 72
    %v1350 = vpop.permute.xlu0 %1349
    %v1352 = vsel %vm179, %v1348, 0
    %v1355 = vsel %vm179, %v1350, 0
    %1357 = vmatpush.bf16.xpose.msra.mxu0 0
    %1358 = vmatpush.bf16.xpose.msra.mxu0 0
    %1359 = vmatpush.bf16.xpose.msra.mxu0 0
    %1360 = vmatpush.bf16.xpose.msra.mxu0 0
    %1361 = vmatpush.bf16.xpose.msra.mxu0 0
    %1362 = vmatpush.bf16.xpose.msra.mxu0 0
    %1363 = vmatpush.bf16.xpose.msra.mxu0 0
    %1364 = vmatpush.bf16.xpose.msra.mxu0 %v1355
    %1365 = vmatmul.bf16.gmra.mxu0 %v1352
    %v1366 = vpop.f32.mrf.mxu0
    %v1367 = vadd.f32 0.0, %v1366
    %v1368 = vpop.f32.mrf.mxu0
    %1369 = vdwg.mxu0
    %1370 = vrot.lane.b32.xlu0 %v1023, 104
    %v1371 = vpop.permute.xlu0 %1370
    %1372 = vrot.lane.b32.xlu0 %v1023, 72
    %v1373 = vpop.permute.xlu0 %1372
    %v1375 = vsel %vm179, %v1371, 0
    %v1378 = vsel %vm179, %v1373, 0
    %1380 = vmatpush.bf16.xpose.msra.mxu0 0
    %1381 = vmatpush.bf16.xpose.msra.mxu0 0
    %1382 = vmatpush.bf16.xpose.msra.mxu0 0
    %1383 = vmatpush.bf16.xpose.msra.mxu0 0
    %1384 = vmatpush.bf16.xpose.msra.mxu0 0
    %1385 = vmatpush.bf16.xpose.msra.mxu0 0
    %1386 = vmatpush.bf16.xpose.msra.mxu0 0
    %1387 = vmatpush.bf16.xpose.msra.mxu0 %v1378
    %1388 = vmatmul.bf16.gmra.mxu0 %v1375
    %v1389 = vpop.f32.mrf.mxu0
    %v1390 = vadd.f32 0.0, %v1389
    %v1391 = vpop.f32.mrf.mxu0
    %1392 = vdwg.mxu0
    %v1393 = vmul.f32 %v1367, 0.35355338
    %v1394 = vmul.f32 %v1390, 0.35355338
    %v1395 = vadd.f32 %v1393, %v225
    %v1396 = vadd.f32 %v1394, %v226
    %v1397 = vsel %vm179, %v1395, -inf
    %1398 = vmax.xlane.f32.xlu0 %v1397
    %v1399 = vpop.xlane.xlu0 %1398
    %v1400 = vsel %vm179, %v1396, -inf
    %1401 = vmax.xlane.f32.xlu0 %v1400
    %v1402 = vpop.xlane.xlu0 %1401
    %v1403 = vsub.f32 %v1395, %v1399
    %v1404 = vsub.f32 %v1396, %v1402
    %v1405 = vmul.f32 %v1403, 1.442695
    %v1406 = vpow.pop %v1405
    %v1407 = vmul.f32 %v1404, 1.442695
    %v1408 = vpow.pop %v1407
    %v1409 = vsel %vm179, %v1406, 0.0
    %1410 = vadd.xlane.f32.xlu0 %v1409
    %v1411 = vpop.xlane.xlu0 %1410
    %v1412 = vsel %vm179, %v1408, 0.0
    %1413 = vadd.xlane.f32.xlu0 %v1412
    %v1414 = vpop.xlane.xlu0 %1413
    %v1415 = vrcp.pop %v1411
    %v1416 = vrcp.pop %v1414
    %v1417 = vmul.f32 %v1406, %v1415
    %v1418 = vmul.f32 %v1408, %v1416
    %v1419 = vpack.c.bf16 %v1417, %v1417
    %v1420 = vpack.c.bf16 %v1418, %v1418
    %1421 = vrot.lane.b32.xlu0 %v999, 40
    %v1422 = vpop.permute.xlu0 %1421
    %v1424 = vsel %vm179, %v1419, 0
    %v1427 = vsel %vm260, %v1422, 0
    %1429 = vmatpush.bf16.msra.mxu0 0
    %1430 = vmatpush.bf16.msra.mxu0 0
    %1431 = vmatpush.bf16.msra.mxu0 0
    %1432 = vmatpush.bf16.msra.mxu0 0
    %1433 = vmatpush.bf16.msra.mxu0 0
    %1434 = vmatpush.bf16.msra.mxu0 0
    %1435 = vmatpush.bf16.msra.mxu0 0
    %1436 = vmatpush.bf16.msra.mxu0 %v1427
    %1437 = vmatmul.bf16.gmra.mxu0 %v1424
    %v1438 = vpop.f32.mrf.mxu0
    %v1439 = vadd.f32 0.0, %v1438
    %v1440 = vpop.f32.mrf.mxu0
    %1441 = vdwg.mxu0
    %1442 = vrot.lane.b32.xlu0 %v1023, 40
    %v1443 = vpop.permute.xlu0 %1442
    %v1445 = vsel %vm179, %v1420, 0
    %v1448 = vsel %vm260, %v1443, 0
    %1450 = vmatpush.bf16.msra.mxu0 0
    %1451 = vmatpush.bf16.msra.mxu0 0
    %1452 = vmatpush.bf16.msra.mxu0 0
    %1453 = vmatpush.bf16.msra.mxu0 0
    %1454 = vmatpush.bf16.msra.mxu0 0
    %1455 = vmatpush.bf16.msra.mxu0 0
    %1456 = vmatpush.bf16.msra.mxu0 0
    %1457 = vmatpush.bf16.msra.mxu0 %v1448
    %1458 = vmatmul.bf16.gmra.mxu0 %v1445
    %v1459 = vpop.f32.mrf.mxu0
    %v1460 = vadd.f32 0.0, %v1459
    %v1461 = vpop.f32.mrf.mxu0
    %1462 = vdwg.mxu0
    %1465 = vrot.lane.b32.xlu0 %v1207, 8
    %v1466 = vpop.permute.xlu0 %1465
    %1467 = vrot.lane.b32.xlu0 %v1228, 8
    %v1468 = vpop.permute.xlu0 %1467
    %1473 = vrot.lane.b32.xlu0 %v1323, 16
    %v1474 = vpop.permute.xlu0 %1473
    %1475 = vrot.lane.b32.xlu0 %v1344, 16
    %v1476 = vpop.permute.xlu0 %1475
    %1481 = vrot.lane.b32.xlu0 %v1439, 24
    %v1482 = vpop.permute.xlu0 %1481
    %1483 = vrot.lane.b32.xlu0 %v1460, 24
    %v1484 = vpop.permute.xlu0 %1483
    %v1487 = vsel %vm179, %v1091, %v1466
    %v1488 = vsel %vm179, %v1112, %v1468
    %v1489 = vsel %vm672, %v1487, %v1474
    %v1490 = vsel %vm672, %v1488, %v1476
    %v1491 = vsel %vm675, %v1489, %v1482
    %v1492 = vsel %vm675, %v1490, %v1484
    %s1493 = scalar_lea.vmem %s7, 32
    %v1494 = vld [vmem:[%s1493] sm:$0xff]
    %v1495 = vld [vmem:[%s1493 + $0x8] sm:$0xff]
    %v1496 = vld [vmem:[%s1493 + $0x10] sm:$0xff]
    %v1497 = vld [vmem:[%s1493 + $0x18] sm:$0xff]
    %v1498 = vpack.c.bf16 %v1492, %v1491
    %v1499 = vpack.c.bf16 %v1495, %v1494
    %v1500 = vpack.c.bf16 %v1497, %v1496
    %s1501 = scalar_lea.vmem %s8, 1
    %v1502 = vld [vmem:[%s1501] sm:$0x1]
    %v1504 = vperm.slane %v1502, 0
    %v1507 = vsel %vm77, %v1498, 0
    %1509 = vmatpush.bf16.msra.mxu0 0
    %1510 = vmatpush.bf16.msra.mxu0 0
    %1511 = vmatpush.bf16.msra.mxu0 0
    %1512 = vmatpush.bf16.msra.mxu0 0
    %1513 = vmatpush.bf16.msra.mxu0 0
    %1514 = vmatpush.bf16.msra.mxu0 0
    %1515 = vmatpush.bf16.msra.mxu0 %v1500
    %1516 = vmatpush.bf16.msra.mxu0 %v1499
    %1517 = vmatmul.bf16.gmra.mxu0 %v1507
    %v1518 = vpop.f32.mrf.mxu0
    %v1519 = vadd.f32 %v1504, %v1518
    %v1520 = vpop.f32.mrf.mxu0
    %v1521 = vadd.f32 %v1504, %v1520
    %1522 = vdwg.mxu0
    %v1523 = vadd.f32 %v963, %v1519
    %v1524 = vadd.f32 %v964, %v1521
    %s1525 = scalar_lea.vmem %s9, 1
    %v1526 = vld [vmem:[%s1525] sm:$0x1]
    %s1527 = scalar_lea.vmem %s10, 1
    %v1528 = vld [vmem:[%s1527] sm:$0x1]
    %v1529 = vsel %vm77, %v1523, 0.0
    %1530 = vadd.xlane.f32.xlu0 %v1529
    %v1531 = vpop.xlane.xlu0 %1530
    %v1532 = vsel %vm77, %v1524, 0.0
    %1533 = vadd.xlane.f32.xlu0 %v1532
    %v1534 = vpop.xlane.xlu0 %1533
    %v1535 = vmul.f32 %v1531, %v90
    %v1536 = vmul.f32 %v1534, %v90
    %v1537 = vsub.f32 %v1523, %v1535
    %v1538 = vsub.f32 %v1524, %v1536
    %v1539 = vmul.f32 %v1537, %v1537
    %v1540 = vmul.f32 %v1538, %v1538
    %v1541 = vsel %vm77, %v1539, 0.0
    %1542 = vadd.xlane.f32.xlu0 %v1541
    %v1543 = vpop.xlane.xlu0 %1542
    %v1544 = vsel %vm77, %v1540, 0.0
    %1545 = vadd.xlane.f32.xlu0 %v1544
    %v1546 = vpop.xlane.xlu0 %1545
    %v1547 = vmul.f32 %v1543, %v90
    %v1548 = vmul.f32 %v1546, %v90
    %v1549 = vadd.f32 %v1547, 1e-12
    %v1550 = vadd.f32 %v1548, 1e-12
    %v1551 = vrsqrt.pop %v1549
    %v1552 = vmul.f32 %v1551, %v1549
    %v1553 = vmul.f32 %v1552, %v1551
    %v1554 = vmul.f32 0.5, %v1553
    %v1555 = vsub.f32 1.5, %v1554
    %v1556 = vmul.f32 %v1551, %v1555
    %vm1557 = vweird.f32 %v1549
    %vm1558 = vweird.f32 %v1551
    %vm1559 = vmor %vm1557, %vm1558
    %v1560 = vsel %vm1559, %v1551, %v1556
    %v1561 = vrsqrt.pop %v1550
    %v1562 = vmul.f32 %v1561, %v1550
    %v1563 = vmul.f32 %v1562, %v1561
    %v1564 = vmul.f32 0.5, %v1563
    %v1565 = vsub.f32 1.5, %v1564
    %v1566 = vmul.f32 %v1561, %v1565
    %vm1567 = vweird.f32 %v1550
    %vm1568 = vweird.f32 %v1561
    %vm1569 = vmor %vm1567, %vm1568
    %v1570 = vsel %vm1569, %v1561, %v1566
    %v1571 = vmul.f32 %v1537, %v1560
    %v1572 = vmul.f32 %v1538, %v1570
    %v1574 = vperm.slane %v1526, 0
    %v1576 = vmul.f32 %v1571, %v1574
    %v1577 = vmul.f32 %v1572, %v1574
    %v1579 = vperm.slane %v1528, 0
    %v1581 = vadd.f32 %v1576, %v1579
    %v1582 = vadd.f32 %v1577, %v1579
    %s1583 = scalar_lea.vmem %s11, 32
    %v1584 = vld [vmem:[%s1583] sm:$0xff]
    %v1585 = vld [vmem:[%s1583 + $0x8] sm:$0xff]
    %v1586 = vld [vmem:[%s1583 + $0x10] sm:$0xff]
    %v1587 = vld [vmem:[%s1583 + $0x18] sm:$0xff]
    %v1588 = vpack.c.bf16 %v1582, %v1581
    %v1589 = vpack.c.bf16 %v1585, %v1584
    %v1590 = vpack.c.bf16 %v1587, %v1586
    %s1591 = scalar_lea.vmem %s12, 1
    %v1592 = vld [vmem:[%s1591] sm:$0x1]
    %v1594 = vperm.slane %v1592, 0
    %v1597 = vsel %vm77, %v1588, 0
    %1599 = vmatpush.bf16.msra.mxu0 0
    %1600 = vmatpush.bf16.msra.mxu0 0
    %1601 = vmatpush.bf16.msra.mxu0 0
    %1602 = vmatpush.bf16.msra.mxu0 0
    %1603 = vmatpush.bf16.msra.mxu0 0
    %1604 = vmatpush.bf16.msra.mxu0 0
    %1605 = vmatpush.bf16.msra.mxu0 %v1590
    %1606 = vmatpush.bf16.msra.mxu0 %v1589
    %1607 = vmatmul.bf16.gmra.mxu0 %v1597
    %v1608 = vpop.f32.mrf.mxu0
    %v1609 = vadd.f32 %v1594, %v1608
    %v1610 = vpop.f32.mrf.mxu0
    %v1611 = vadd.f32 %v1594, %v1610
    %1612 = vdwg.mxu0
    %v1613 = vmul.f32 %v1609, 0.5
    %v1614 = vmul.f32 %v1611, 0.5
    %v1615 = vmul.f32 %v1609, 0.70710677
    %v1616 = vmul.f32 %v1611, 0.70710677
    %vm1617 = vcmp.ge.f32.partialorder %v1615, 0.0
    %vm1618 = vcmp.ge.f32.partialorder %v1616, 0.0
    %v1619 = vsel %vm1617, 1.0, -1.0
    %v1620 = vsel %vm1618, 1.0, -1.0
    %v1621 = vand.u32 2147483647, %v1615
    %v1622 = vand.u32 2147483647, %v1616
    %v1623 = vmul.f32 %v1621, 0.3275911
    %v1624 = vmul.f32 %v1622, 0.3275911
    %v1625 = vadd.f32 %v1623, 1.0
    %v1626 = vadd.f32 %v1624, 1.0
    %v1627 = vrcp.pop %v1625
    %v1628 = vmul.f32 %v1625, %v1627
    %v1629 = vsub.f32 1.0, %v1628
    %v1630 = vmul.f32 %v1627, %v1629
    %v1631 = vadd.f32 %v1627, %v1630
    %vm1632 = vweird.f32 %v1625
    %vm1633 = vweird.f32 %v1627
    %vm1634 = vmor %vm1632, %vm1633
    %v1635 = vsel %vm1634, %v1627, %v1631
    %v1636 = vand.u32 2147483647, %v1625
    %vm1637 = vcmp.eq.f32.partialorder %v1636, 8.507059e+37
    %v1638 = vand.u32 %v1625, 2147483648
    %v1639 = vor.u32 1.1754944e-38, %v1638
    %v1640 = vsel %vm1637, %v1639, %v1635
    %v1641 = vmul.f32 1.0, %v1640
    %v1642 = vrcp.pop %v1626
    %v1643 = vmul.f32 %v1626, %v1642
    %v1644 = vsub.f32 1.0, %v1643
    %v1645 = vmul.f32 %v1642, %v1644
    %v1646 = vadd.f32 %v1642, %v1645
    %vm1647 = vweird.f32 %v1626
    %vm1648 = vweird.f32 %v1642
    %vm1649 = vmor %vm1647, %vm1648
    %v1650 = vsel %vm1649, %v1642, %v1646
    %v1651 = vand.u32 2147483647, %v1626
    %vm1652 = vcmp.eq.f32.partialorder %v1651, 8.507059e+37
    %v1653 = vand.u32 %v1626, 2147483648
    %v1654 = vor.u32 1.1754944e-38, %v1653
    %v1655 = vsel %vm1652, %v1654, %v1650
    %v1656 = vmul.f32 1.0, %v1655
    %v1657 = vmul.f32 %v1641, 1.0614054
    %v1658 = vmul.f32 %v1656, 1.0614054
    %v1659 = vadd.f32 %v1657, -1.4531521
    %v1660 = vadd.f32 %v1658, -1.4531521
    %v1661 = vmul.f32 %v1659, %v1641
    %v1662 = vmul.f32 %v1660, %v1656
    %v1663 = vadd.f32 %v1661, 1.4214138
    %v1664 = vadd.f32 %v1662, 1.4214138
    %v1665 = vmul.f32 %v1663, %v1641
    %v1666 = vmul.f32 %v1664, %v1656
    %v1667 = vadd.f32 %v1665, -0.28449672
    %v1668 = vadd.f32 %v1666, -0.28449672
    %v1669 = vmul.f32 %v1667, %v1641
    %v1670 = vmul.f32 %v1668, %v1656
    %v1671 = vadd.f32 %v1669, 0.2548296
    %v1672 = vadd.f32 %v1670, 0.2548296
    %v1673 = vmul.f32 %v1671, %v1641
    %v1674 = vmul.f32 %v1672, %v1656
    %v1675 = vsub.f32 0.0, %v1621
    %v1676 = vsub.f32 0.0, %v1622
    %v1677 = vmul.f32 %v1675, %v1621
    %v1678 = vmul.f32 %v1676, %v1622
    %v1679 = vmul.f32 %v1677, 1.442695
    %v1680 = vpow.pop %v1679
    %v1681 = vmul.f32 %v1678, 1.442695
    %v1682 = vpow.pop %v1681
    %v1683 = vmul.f32 %v1673, %v1680
    %v1684 = vmul.f32 %v1674, %v1682
    %v1685 = vsub.f32 1.0, %v1683
    %v1686 = vsub.f32 1.0, %v1684
    %v1687 = vmul.f32 %v1619, %v1685
    %v1688 = vmul.f32 %v1620, %v1686
    %v1689 = vadd.f32 %v1687, 1.0
    %v1690 = vadd.f32 %v1688, 1.0
    %v1691 = vmul.f32 %v1613, %v1689
    %v1692 = vmul.f32 %v1614, %v1690
    %s1693 = scalar_lea.vmem %s13, 64
    %v1694 = vld [vmem:[%s1693] sm:$0xff]
    %v1695 = vld [vmem:[%s1693 + $0x8] sm:$0xff]
    %v1696 = vld [vmem:[%s1693 + $0x10] sm:$0xff]
    %v1697 = vld [vmem:[%s1693 + $0x18] sm:$0xff]
    %v1698 = vld [vmem:[%s1693 + $0x20] sm:$0xff]
    %v1699 = vld [vmem:[%s1693 + $0x28] sm:$0xff]
    %v1700 = vld [vmem:[%s1693 + $0x30] sm:$0xff]
    %v1701 = vld [vmem:[%s1693 + $0x38] sm:$0xff]
    %v1702 = vpack.c.bf16 %v1692, %v1691
    %v1703 = vpack.c.bf16 %v1695, %v1694
    %v1704 = vpack.c.bf16 %v1697, %v1696
    %v1705 = vpack.c.bf16 %v1699, %v1698
    %v1706 = vpack.c.bf16 %v1701, %v1700
    %s1707 = scalar_lea.vmem %s14, 1
    %v1708 = vld [vmem:[%s1707] sm:$0x1]
    %v1710 = vperm.slane %v1708, 0
    %v1713 = vsel %vm889, %v1702, 0
    %1715 = vmatpush.bf16.msra.mxu0 0
    %1716 = vmatpush.bf16.msra.mxu0 0
    %1717 = vmatpush.bf16.msra.mxu0 0
    %1718 = vmatpush.bf16.msra.mxu0 0
    %1719 = vmatpush.bf16.msra.mxu0 %v1706
    %1720 = vmatpush.bf16.msra.mxu0 %v1705
    %1721 = vmatpush.bf16.msra.mxu0 %v1704
    %1722 = vmatpush.bf16.msra.mxu0 %v1703
    %1723 = vmatmul.bf16.gmra.mxu0 %v1713
    %v1724 = vpop.f32.mrf.mxu0
    %v1725 = vadd.f32 %v1710, %v1724
    %v1726 = vpop.f32.mrf.mxu0
    %v1727 = vadd.f32 %v1710, %v1726
    %1728 = vdwg.mxu0
    %v1729 = vadd.f32 %v1581, %v1725
    %v1730 = vadd.f32 %v1582, %v1727
    %s1731 = scalar_lea.vmem %s15, 1
    %v1732 = vld [vmem:[%s1731] sm:$0x1]
    %s1733 = scalar_lea.vmem %s16, 1
    %v1734 = vld [vmem:[%s1733] sm:$0x1]
    %v1735 = vsel %vm77, %v1729, 0.0
    %1736 = vadd.xlane.f32.xlu0 %v1735
    %v1737 = vpop.xlane.xlu0 %1736
    %v1738 = vsel %vm77, %v1730, 0.0
    %1739 = vadd.xlane.f32.xlu0 %v1738
    %v1740 = vpop.xlane.xlu0 %1739
    %v1741 = vmul.f32 %v1737, %v90
    %v1742 = vmul.f32 %v1740, %v90
    %v1743 = vsub.f32 %v1729, %v1741
    %v1744 = vsub.f32 %v1730, %v1742
    %v1745 = vmul.f32 %v1743, %v1743
    %v1746 = vmul.f32 %v1744, %v1744
    %v1747 = vsel %vm77, %v1745, 0.0
    %1748 = vadd.xlane.f32.xlu0 %v1747
    %v1749 = vpop.xlane.xlu0 %1748
    %v1750 = vsel %vm77, %v1746, 0.0
    %1751 = vadd.xlane.f32.xlu0 %v1750
    %v1752 = vpop.xlane.xlu0 %1751
    %v1753 = vmul.f32 %v1749, %v90
    %v1754 = vmul.f32 %v1752, %v90
    %v1755 = vadd.f32 %v1753, 1e-12
    %v1756 = vadd.f32 %v1754, 1e-12
    %v1757 = vrsqrt.pop %v1755
    %v1758 = vmul.f32 %v1757, %v1755
    %v1759 = vmul.f32 %v1758, %v1757
    %v1760 = vmul.f32 0.5, %v1759
    %v1761 = vsub.f32 1.5, %v1760
    %v1762 = vmul.f32 %v1757, %v1761
    %vm1763 = vweird.f32 %v1755
    %vm1764 = vweird.f32 %v1757
    %vm1765 = vmor %vm1763, %vm1764
    %v1766 = vsel %vm1765, %v1757, %v1762
    %v1767 = vrsqrt.pop %v1756
    %v1768 = vmul.f32 %v1767, %v1756
    %v1769 = vmul.f32 %v1768, %v1767
    %v1770 = vmul.f32 0.5, %v1769
    %v1771 = vsub.f32 1.5, %v1770
    %v1772 = vmul.f32 %v1767, %v1771
    %vm1773 = vweird.f32 %v1756
    %vm1774 = vweird.f32 %v1767
    %vm1775 = vmor %vm1773, %vm1774
    %v1776 = vsel %vm1775, %v1767, %v1772
    %v1777 = vmul.f32 %v1743, %v1766
    %v1778 = vmul.f32 %v1744, %v1776
    %v1780 = vperm.slane %v1732, 0
    %v1782 = vmul.f32 %v1777, %v1780
    %v1783 = vmul.f32 %v1778, %v1780
    %v1785 = vperm.slane %v1734, 0
    %v1787 = vadd.f32 %v1782, %v1785
    %v1788 = vadd.f32 %v1783, %v1785
    %v1789 = vld [vmem:[%s17] sm:$0xff]
    %v1790 = vld [vmem:[%s17 + $0x8] sm:$0xff]
    %v1791 = vld [vmem:[%s17 + $0x10] sm:$0xff]
    %v1792 = vld [vmem:[%s17 + $0x18] sm:$0xff]
    %v1793 = vpack.c.bf16 %v1787, %v1787
    %v1794 = vpack.c.bf16 %v1788, %v1788
    %v1795 = vpack.c.bf16 %v1790, %v1789
    %v1796 = vpack.c.bf16 %v1792, %v1791
    %v1797 = vld [vmem:[%s18] sm:$0x1]
    %v1799 = vperm.slane %v1797, 0
    %v1803 = vunpack.c.l.b16 %v1793
    %v1804 = vunpack.c.l.b16 %v1794
    %v1805 = vrot.slane %v1804, 7
    %vm1806 = vcmask 1041409
    %v1807 = vsel %vm1806, %v1805, %v1803
    %v1808 = vpack.c.b16 %v1807, %v1807
    %v1810 = vsel %vm77, %v1808, 0
    %1812 = vmatpush.bf16.msra.mxu0 0
    %1813 = vmatpush.bf16.msra.mxu0 0
    %1814 = vmatpush.bf16.msra.mxu0 0
    %1815 = vmatpush.bf16.msra.mxu0 0
    %1816 = vmatpush.bf16.msra.mxu0 0
    %1817 = vmatpush.bf16.msra.mxu0 0
    %1818 = vmatpush.bf16.msra.mxu0 %v1796
    %1819 = vmatpush.bf16.msra.mxu0 %v1795
    %1820 = vmatmul.bf16.gmra.mxu0 %v1810
    %v1821 = vpop.f32.mrf.mxu0
    %v1822 = vadd.f32 %v1799, %v1821
    %v1823 = vpop.f32.mrf.mxu0
    %1824 = vdwg.mxu0
    %v1825 = vtanh.pop %v1822
    %v1826 = vld [vmem:[%s19] sm:$0xff]
    %v1827 = vld [vmem:[%s19 + $0x8] sm:$0xff]
    %v1828 = vld [vmem:[%s19 + $0x10] sm:$0xff]
    %v1829 = vld [vmem:[%s19 + $0x18] sm:$0xff]
    %v1830 = vpack.c.bf16 %v1825, %v1825
    %v1831 = vpack.c.bf16 %v1827, %v1826
    %v1832 = vpack.c.bf16 %v1829, %v1828
    %v1833 = vld [vmem:[%s20] sm:$0x1]
    %v1835 = vperm.slane %v1833, 0
    %v1838 = vsel %vm77, %v1830, 0
    %1840 = vmatpush.bf16.msra.mxu0 0
    %1841 = vmatpush.bf16.msra.mxu0 0
    %1842 = vmatpush.bf16.msra.mxu0 0
    %1843 = vmatpush.bf16.msra.mxu0 0
    %1844 = vmatpush.bf16.msra.mxu0 0
    %1845 = vmatpush.bf16.msra.mxu0 0
    %1846 = vmatpush.bf16.msra.mxu0 %v1832
    %1847 = vmatpush.bf16.msra.mxu0 %v1831
    %1848 = vmatmul.bf16.gmra.mxu0 %v1838
    %v1849 = vpop.f32.mrf.mxu0
    %v1850 = vadd.f32 %v1835, %v1849
    %v1851 = vpop.f32.mrf.mxu0
    %1852 = vdwg.mxu0
    %vm1853 = vcmask 17408
    %1854 = vst.msk [vmem:[#allocation4] sm:$0x3] %vm1853, %v1850
    %v1855 = vsel %vm1853, %v1850, -inf
    %1856 = vmax.xlane.f32.xlu0 %v1855
    %v1857 = vpop.xlane.xlu0 %1856
    %v1858 = vsub.f32 %v1850, %v1857
    %v1859 = vmul.f32 %v1858, 1.442695
    %v1860 = vpow.pop %v1859
    %v1861 = vsel %vm1853, %v1860, 0.0
    %1862 = vadd.xlane.f32.xlu0 %v1861
    %v1863 = vpop.xlane.xlu0 %1862
    %v1864 = vlog2.pop %v1863
    %v1865 = vmul.f32 %v1864, 0.6931472
    %v1866 = vsub.f32 %v1858, %v1865
    %v1867 = vld [vmem:[%s2] sm:$0x3]
    %v1868 = vmul.f32 %v1867, %v1866
    %v1869 = vsel %vm1853, %v1868, 0.0
    %1870 = vadd.xlane.f32.xlu0 %v1869
    %v1871 = vpop.xlane.xlu0 %1870
    %v1872 = vsub.f32 0.0, %v1871
    %vm1873 = vcmask 1041408
    %v1874 = vsel %vm1873, %v1872, 0.0
    %v1875 = vrot.slane %v1874, 4
    %v1876 = vadd.f32 %v1874, %v1875
    %v1877 = vrot.slane %v1876, 2
    %v1878 = vadd.f32 %v1876, %v1877
    %v1879 = vrot.slane %v1878, 1
    %v1880 = vadd.f32 %v1878, %v1879
    %v1881 = vmul.f32 %v1880, 0.5
    %vm1882 = vcmask 0
    %1883 = vst.msk [vmem:[#allocation2] sm:$0x1] %vm1882, %v1881
    // Predicated region
    $region86: #{forward.1} parent=1 // pred_check
      _
    $region87: #{forward.1} parent=1 // pred_check_branch
      %1885 = sbr.rel (0) target = $region89
    $region88: #{forward.1} parent=1 // pred_region
      %1887 = vsyncadd [#allocation3], 0
      %s1889 = sshll.u32 [#allocation2], 4
      %s1890 = int_to_ptr.vmem [resolvable:$true] %s1889
      %s1891 = sshll.u32 %s21, 4
      %s1892 = int_to_ptr.hbm [resolvable:$true] %s1891
      %1894 = dma.vmem_to_hbm [thread:$0]  %s1890, 16, %s1892, [#allocation3]
    $region89: #{forward.1} parent=1 // pred_fallthru
      _
    // Predicated region
    $region90: #{forward.1} parent=1 // pred_check
      _
    $region91: #{forward.1} parent=1 // pred_check_branch
      %1896 = sbr.rel (0) target = $region93
    $region92: #{forward.1} parent=1 // pred_region
      %1898 = vsyncadd [#allocation5], 0
      %s1900 = sshll.u32 [#allocation4], 4
      %s1901 = int_to_ptr.vmem [resolvable:$true] %s1900
      %s1902 = sshll.u32 %s22, 4
      %s1903 = int_to_ptr.hbm [resolvable:$true] %s1902
      %1905 = dma.vmem_to_hbm [thread:$0]  %s1901, 32, %s1903, [#allocation5]
    $region93: #{forward.1} parent=1 // pred_fallthru
      _
    // Predicated region
    $region94: #{forward.1} parent=1 // pred_check
      _
    $region95: #{forward.1} parent=1 // pred_check_branch
      %1907 = sbr.rel (0) target = $region97
    $region96: #{forward.1} parent=1 // pred_region
      %1909 = dma.done [#allocation3], 16
    $region97: #{forward.1} parent=1 // pred_fallthru
      _
    // Predicated region
    $region98: #{forward.1} parent=1 // pred_check
      _
    $region99: #{forward.1} parent=1 // pred_check_branch
      %1911 = sbr.rel (0) target = $region101
    $region100: #{forward.1} parent=1 // pred_region
      %1913 = dma.done [#allocation5], 32
    $region101: #{forward.1} parent=1 // pred_fallthru
      _
    %1914 = vsyncpa [#allocation3], 1
    %1915 = vsyncpa [#allocation5], 1

</llo_original>
